<compile_context>
chip_gen: v7x
topology: tpu7x:2x2x1
jax: 0.10.0
libtpu: 0.0.40
codegen_flags: <defaults>
</compile_context>

<pallas_src>
import jax
import jax.numpy as jnp
from jax import lax
from jax.experimental import pallas as pl
from jax.experimental.pallas import tpu as pltpu

# ----- small, CLIP-like hyperparameters (correctness harness sizes) -----
N        = 2      # batch (number of prompts)
L        = 8      # sequence length
D        = 32     # transformer width
H        = 4      # attention heads
DH       = D // H
DEPTH    = 2      # transformer layers
PROJ     = 16     # text projection dim
PROJ_PAD = 128    # lane-dense padded projection width (sliced back in wrapper)
EPS      = 1e-5
NEG      = -1e9   # causal-mask fill value
BN       = N      # batch tile (whole batch per tile at this toy size; see note above)


def _layernorm(x, g, b):
    mu = jnp.mean(x, axis=-1, keepdims=True)
    xc = x - mu
    var = jnp.mean(xc * xc, axis=-1, keepdims=True)
    return xc * lax.rsqrt(var + EPS) * g + b


def text_encoder_kernel(eot_ref,                     # SMEM scalar-prefetch: (N,) int32
                        prompts_ref, pos_ref,
                        ln1_g_ref, ln1_b_ref,
                        qkv_w_ref, qkv_b_ref,        # fused (D, 3D) in-projection
                        ow_ref, ob_ref,              # out-proj, head-major rows (H, DH, D)
                        ln2_g_ref, ln2_b_ref,
                        fc1_w_ref, fc1_b_ref, fc2_w_ref, fc2_b_ref,
                        lnf_g_ref, lnf_b_ref, proj_ref,
                        o_ref,
                        x_ref):                      # VMEM scratch: residual stream (BN, L, D) f32
    f32, bf16 = jnp.float32, jnp.bfloat16
    bt = pl.program_id(0)
    layer = pl.program_id(1)
    T = BN * L

    # ---- init residual stream at the first layer of each batch tile ----
    @pl.when(layer == 0)
    def _init():
        x_ref[...] = prompts_ref[...] + pos_ref[...][None, :, :]

    # causal mask predicate (folded into a where on the scores; no mask add)
    row = lax.broadcasted_iota(jnp.int32, (L, L), 0)
    col = lax.broadcasted_iota(jnp.int32, (L, L), 1)
    causal = col <= row                                     # (L, L) bool

    x = x_ref[...]                                          # (BN, L, D) f32

    # -------- attention sublayer: x = x + attn(ln_1(x)) --------
    h2 = _layernorm(x, ln1_g_ref[0], ln1_b_ref[0]).reshape(T, D).astype(bf16)     # (T, D)

    # single lane-dense fused QKV projection (no per-head matmuls, no broadcast)
    qkv = jnp.dot(h2, qkv_w_ref[0], preferred_element_type=f32) + qkv_b_ref[0]    # (T, 3D) f32

    scale = 1.0 / (DH ** 0.5)
    q_heads, k_heads, v_heads = [], [], []
    for h in range(H):                                      # static lane slices per head
        q_heads.append((qkv[:, h * DH:(h + 1) * DH] * scale).reshape(BN, L, DH))
        k_heads.append(qkv[:, D + h * DH:D + (h + 1) * DH].reshape(BN, L, DH))
        v_heads.append(qkv[:, 2 * D + h * DH:2 * D + (h + 1) * DH].reshape(BN, L, DH))
    qh = jnp.concatenate(q_heads, axis=0).astype(bf16)      # (H*BN, L, DH), leading-axis concat
    kh = jnp.concatenate(k_heads, axis=0).astype(bf16)
    vh = jnp.concatenate(v_heads, axis=0).astype(bf16)

    s = jnp.einsum('bqd,bkd->bqk', qh, kh, preferred_element_type=f32)   # (H*BN, L, L)
    s = jnp.where(causal[None, :, :], s, NEG)
    s = s - jnp.max(s, axis=-1, keepdims=True)
    p = jnp.exp(s)
    p = p * pl.reciprocal(jnp.sum(p, axis=-1, keepdims=True), approx=True)   # softmax denom on EUP

    av = jnp.einsum('bqk,bkd->bqd', p.astype(bf16), vh, preferred_element_type=f32)  # (H*BN, L, DH)

    # fused output projection + head-sum: accumulate per-head partial products
    # directly into one (T, D) f32 accumulator (no (H, T, D) intermediate)
    attn = jnp.zeros((T, D), f32)
    for h in range(H):
        av_h = av[h * BN:(h + 1) * BN].reshape(T, DH).astype(bf16)
        attn = attn + jnp.dot(av_h, ow_ref[0, h], preferred_element_type=f32)
    attn = attn + ob_ref[0]

    # write the attention residual back to scratch (shortens f32 vreg live range)
    x_ref[...] = x + attn.reshape(BN, L, D)

    # -------- MLP sublayer: x = x + mlp(ln_2(x)), QuickGELU --------
    x = x_ref[...]
    h2 = _layernorm(x, ln2_g_ref[0], ln2_b_ref[0]).reshape(T, D).astype(bf16)
    u = jnp.dot(h2, fc1_w_ref[0], preferred_element_type=f32) + fc1_b_ref[0]       # (T, 4D)
    u = u * (1.0 / (1.0 + jnp.exp(-1.702 * u)))              # exact QuickGELU (parity)
    m = jnp.dot(u.astype(bf16), fc2_w_ref[0], preferred_element_type=f32) + fc2_b_ref[0]
    x_ref[...] = x + m.reshape(BN, L, D)

    # -------- final layer only: EOT gather -> ln_final -> projection --------
    @pl.when(layer == pl.num_programs(1) - 1)
    def _final():
        # BN is small here; for large BN replace with a one-hot contraction.
        rows = []
        for n in range(BN):
            e = eot_ref[bt * BN + n]                         # SMEM scalar read
            r = x_ref[pl.ds(n, 1), pl.ds(e, 1), :]           # (1, 1, D) dynamic row read
            rows.append(r.reshape(1, D))
        feats = jnp.concatenate(rows, axis=0)                # (BN, D)
        feats = _layernorm(feats, lnf_g_ref[...], lnf_b_ref[...])   # ln_final on gathered rows
        o_ref[...] = jnp.dot(feats.astype(bf16), proj_ref[...],
                             preferred_element_type=f32)     # (BN, PROJ_PAD), lane-dense store


def _per_layer(*dims):
    zeros = (0,) * len(dims)
    return pl.BlockSpec((1,) + tuple(dims), lambda bt, l, e, _z=zeros: (l,) + _z)


def _shared(*dims):
    zeros = (0,) * len(dims)
    return pl.BlockSpec(tuple(dims), lambda bt, l, e, _z=zeros: _z)


def _vmem_limit_bytes():
    # Re-derived per chip generation (review): leave headroom under physical
    # VMEM (128 MiB v5e/v6e, 64 MiB v7x) so double-buffered per-layer weight
    # prefetch survives at real CLIP widths; at real size on v7x also consider
    # tiling the 4D MLP dim instead of raising the limit.
    try:
        cap = pltpu.get_tpu_info().vmem_capacity_bytes
    except Exception:
        cap = 64 * 1024 * 1024
    return min(int(cap * 3 // 4), 96 * 1024 * 1024)


def make_params(key):
    ks = jax.random.split(key, 8)
    init = lambda k, shape, s=0.02: (s * jax.random.normal(k, shape)).astype(jnp.float32)
    return dict(
        pos_emb=init(ks[0], (L, D), 0.01),
        ln1_g=jnp.ones((DEPTH, D), jnp.float32),
        ln1_b=jnp.zeros((DEPTH, D), jnp.float32),
        qkv_w=init(ks[1], (DEPTH, D, 3 * D)),
        qkv_b=jnp.zeros((DEPTH, 3 * D), jnp.float32),
        out_w=init(ks[2], (DEPTH, D, D)),
        out_b=jnp.zeros((DEPTH, D), jnp.float32),
        ln2_g=jnp.ones((DEPTH, D), jnp.float32),
        ln2_b=jnp.zeros((DEPTH, D), jnp.float32),
        fc1_w=init(ks[3], (DEPTH, D, 4 * D)),
        fc1_b=jnp.zeros((DEPTH, 4 * D), jnp.float32),
        fc2_w=init(ks[4], (DEPTH, 4 * D, D)),
        fc2_b=jnp.zeros((DEPTH, D), jnp.float32),
        lnf_g=jnp.ones((D,), jnp.float32),
        lnf_b=jnp.zeros((D,), jnp.float32),
        text_proj=init(ks[5], (D, PROJ)),
    )


def text_encoder(prompts, tokenized_prompts, p):
    bf16 = jnp.bfloat16
    # glue: EOT position = argmax over token ids (CLIP convention), prefetched to SMEM
    eot = jnp.argmax(tokenized_prompts, axis=-1).astype(jnp.int32)       # (N,)

    # wrapper-side weight prep (layout only; bf16 for MXU operands)
    out_w_hm = p['out_w'].reshape(DEPTH, H, DH, D).astype(bf16)          # head-major input rows
    proj_pad = jnp.zeros((D, PROJ_PAD), jnp.float32).at[:, :PROJ].set(p['text_proj']).astype(bf16)

    args = (
        prompts, p['pos_emb'],
        p['ln1_g'].reshape(DEPTH, 1, D), p['ln1_b'].reshape(DEPTH, 1, D),
        p['qkv_w'].astype(bf16), p['qkv_b'].reshape(DEPTH, 1, 3 * D),
        out_w_hm, p['out_b'].reshape(DEPTH, 1, D),
        p['ln2_g'].reshape(DEPTH, 1, D), p['ln2_b'].reshape(DEPTH, 1, D),
        p['fc1_w'].astype(bf16), p['fc1_b'].reshape(DEPTH, 1, 4 * D),
        p['fc2_w'].astype(bf16), p['fc2_b'].reshape(DEPTH, 1, D),
        p['lnf_g'].reshape(1, D), p['lnf_b'].reshape(1, D),
        proj_pad,
    )
    in_specs = [
        pl.BlockSpec((BN, L, D), lambda bt, l, e: (bt, 0, 0)),   # prompts
        _shared(L, D),                                           # positional embedding
        _per_layer(1, D), _per_layer(1, D),                      # ln_1 gamma / beta
        _per_layer(D, 3 * D), _per_layer(1, 3 * D),              # fused W_qkv, b_qkv
        _per_layer(H, DH, D), _per_layer(1, D),                  # W_o (head-major), b_o
        _per_layer(1, D), _per_layer(1, D),                      # ln_2 gamma / beta
        _per_layer(D, 4 * D), _per_layer(1, 4 * D),              # fc1 W, b
        _per_layer(4 * D, D), _per_layer(1, D),                  # fc2 W, b
        _shared(1, D), _shared(1, D),                            # ln_final gamma / beta
        _shared(D, PROJ_PAD),                                    # text projection (lane padded)
    ]
    grid_spec = pltpu.PrefetchScalarGridSpec(
        num_scalar_prefetch=1,
        grid=(N // BN, DEPTH),                                   # (batch tiles, layers)
        in_specs=in_specs,
        out_specs=pl.BlockSpec((BN, PROJ_PAD), lambda bt, l, e: (bt, 0)),
        scratch_shapes=[pltpu.VMEM((BN, L, D), jnp.float32)],    # residual stream carry
    )
    out = pl.pallas_call(
        text_encoder_kernel,
        out_shape=jax.ShapeDtypeStruct((N, PROJ_PAD), jnp.float32),
        grid_spec=grid_spec,
        compiler_params=pltpu.CompilerParams(
            dimension_semantics=("parallel", "arbitrary"),
            vmem_limit_bytes=_vmem_limit_bytes()),
    )(eot, *args)
    return out[:, :PROJ]


# ---------------- pure-JAX f32 reference (same math, for a sanity check) ----------------
def text_encoder_ref(prompts, tokenized_prompts, p):
    x = prompts + p['pos_emb'][None]
    row = jnp.arange(L)[:, None]
    col = jnp.arange(L)[None, :]
    mask = jnp.where(col <= row, 0.0, NEG).astype(jnp.float32)
    scale = 1.0 / (DH ** 0.5)

    def ln(x, g, b):
        mu = x.mean(-1, keepdims=True)
        var = ((x - mu) ** 2).mean(-1, keepdims=True)
        return (x - mu) / jnp.sqrt(var + EPS) * g + b

    for layer in range(DEPTH):
        h = ln(x, p['ln1_g'][layer], p['ln1_b'][layer])
        qkv = h @ p['qkv_w'][layer] + p['qkv_b'][layer]
        q, k, v = qkv[..., :D] * scale, qkv[..., D:2 * D], qkv[..., 2 * D:]
        q = q.reshape(N, L, H, DH); k = k.reshape(N, L, H, DH); v = v.reshape(N, L, H, DH)
        s = jnp.einsum('nqhd,nkhd->nhqk', q, k) + mask
        a = jax.nn.softmax(s, axis=-1)
        av = jnp.einsum('nhqk,nkhd->nqhd', a, v).reshape(N, L, D)
        x = x + av @ p['out_w'][layer] + p['out_b'][layer]
        h = ln(x, p['ln2_g'][layer], p['ln2_b'][layer])
        u = h @ p['fc1_w'][layer] + p['fc1_b'][layer]
        u = u * jax.nn.sigmoid(1.702 * u)
        x = x + u @ p['fc2_w'][layer] + p['fc2_b'][layer]
    xf = ln(x, p['lnf_g'], p['lnf_b'])
    eot = jnp.argmax(tokenized_prompts, axis=-1)
    return xf[jnp.arange(N), eot] @ p['text_proj']


if __name__ == "__main__":
    key = jax.random.PRNGKey(0)
    k_prompt, k_tok, k_params = jax.random.split(key, 3)

    prompts = jax.random.normal(k_prompt, (N, L, D), dtype=jnp.float32)
    # synthetic token ids; place a large "EOT" id at a distinct position per prompt
    tokenized = jax.random.randint(k_tok, (N, L), 1, 100, dtype=jnp.int32)
    tokenized = tokenized.at[0, 5].set(49407).at[1, 7].set(49407)

    params = make_params(k_params)

    out = text_encoder(prompts, tokenized, params)
    out = jax.block_until_ready(out)

    ref = text_encoder_ref(prompts, tokenized, params)
    assert out.shape == (N, PROJ)
    assert jnp.allclose(out, ref, atol=2e-2, rtol=2e-2), "mismatch vs reference"

    print("KERNEL_OK")
</pallas_src>

<mosaic_0001>
module attributes {stable_mosaic.version = 11 : i64} {
  func.func @text_encoder_kernel(%arg0: i32, %arg1: i32, %arg2: memref<2xi32, #tpu.memory_space<smem>>, %arg3: memref<2x8x32xf32, #tpu.memory_space<vmem>>, %arg4: memref<8x32xf32, #tpu.memory_space<vmem>>, %arg5: memref<1x1x32xf32, #tpu.memory_space<vmem>>, %arg6: memref<1x1x32xf32, #tpu.memory_space<vmem>>, %arg7: memref<1x32x96xbf16, #tpu.memory_space<vmem>>, %arg8: memref<1x1x96xf32, #tpu.memory_space<vmem>>, %arg9: memref<1x4x8x32xbf16, #tpu.memory_space<vmem>>, %arg10: memref<1x1x32xf32, #tpu.memory_space<vmem>>, %arg11: memref<1x1x32xf32, #tpu.memory_space<vmem>>, %arg12: memref<1x1x32xf32, #tpu.memory_space<vmem>>, %arg13: memref<1x32x128xbf16, #tpu.memory_space<vmem>>, %arg14: memref<1x1x128xf32, #tpu.memory_space<vmem>>, %arg15: memref<1x128x32xbf16, #tpu.memory_space<vmem>>, %arg16: memref<1x1x32xf32, #tpu.memory_space<vmem>>, %arg17: memref<1x32xf32, #tpu.memory_space<vmem>>, %arg18: memref<1x32xf32, #tpu.memory_space<vmem>>, %arg19: memref<32x128xbf16, #tpu.memory_space<vmem>>, %arg20: memref<2x128xf32, #tpu.memory_space<vmem>>, %arg21: memref<2x8x32xf32, #tpu.memory_space<vmem>>) attributes {dimension_semantics = [#tpu.dimension_semantics<parallel>, #tpu.dimension_semantics<arbitrary>], iteration_bounds = array<i64: 1, 2>, scalar_prefetch = 1 : i64, scratch_operands = 1 : i64, tpu.core_type = #tpu.core_type<tc>, window_params = [{transform_indices = @transform_0, window_bounds = array<i64: 2, 8, 32>}, {pipeline_mode = #tpu.pipeline_mode<synchronous>, transform_indices = @transform_1, window_bounds = array<i64: 8, 32>}, {transform_indices = @transform_2, window_bounds = array<i64: 1, 1, 32>}, {transform_indices = @transform_3, window_bounds = array<i64: 1, 1, 32>}, {transform_indices = @transform_4, window_bounds = array<i64: 1, 32, 96>}, {transform_indices = @transform_5, window_bounds = array<i64: 1, 1, 96>}, {transform_indices = @transform_6, window_bounds = array<i64: 1, 4, 8, 32>}, {transform_indices = @transform_7, window_bounds = array<i64: 1, 1, 32>}, {transform_indices = @transform_8, window_bounds = array<i64: 1, 1, 32>}, {transform_indices = @transform_9, window_bounds = array<i64: 1, 1, 32>}, {transform_indices = @transform_10, window_bounds = array<i64: 1, 32, 128>}, {transform_indices = @transform_11, window_bounds = array<i64: 1, 1, 128>}, {transform_indices = @transform_12, window_bounds = array<i64: 1, 128, 32>}, {transform_indices = @transform_13, window_bounds = array<i64: 1, 1, 32>}, {pipeline_mode = #tpu.pipeline_mode<synchronous>, transform_indices = @transform_14, window_bounds = array<i64: 1, 32>}, {pipeline_mode = #tpu.pipeline_mode<synchronous>, transform_indices = @transform_15, window_bounds = array<i64: 1, 32>}, {pipeline_mode = #tpu.pipeline_mode<synchronous>, transform_indices = @transform_16, window_bounds = array<i64: 32, 128>}, {transform_indices = @transform_17, window_bounds = array<i64: 2, 128>}]} {
    %c0_i32 = arith.constant 0 : i32
    %0 = arith.cmpi eq, %arg1, %c0_i32 : i32
    %1 = arith.extui %0 : i1 to i32
    %c0_i32_0 = arith.constant 0 : i32
    %2 = arith.cmpi ne, %1, %c0_i32_0 : i32
    scf.if %2 {
      %c0_88 = arith.constant 0 : index
      %c0_89 = arith.constant 0 : index
      %c0_90 = arith.constant 0 : index
      %192 = vector.load %arg3[%c0_88, %c0_89, %c0_90] : memref<2x8x32xf32, #tpu.memory_space<vmem>>, vector<2x8x32xf32>
      %c0_91 = arith.constant 0 : index
      %c0_92 = arith.constant 0 : index
      %193 = vector.load %arg4[%c0_91, %c0_92] : memref<8x32xf32, #tpu.memory_space<vmem>>, vector<8x32xf32>
      %194 = vector.shape_cast %193 : vector<8x32xf32> to vector<1x8x32xf32>
      %195 = vector.broadcast %194 : vector<1x8x32xf32> to vector<2x8x32xf32>
      %196 = arith.addf %192, %195 : vector<2x8x32xf32>
      %c0_93 = arith.constant 0 : index
      %c0_94 = arith.constant 0 : index
      %c0_95 = arith.constant 0 : index
      %197 = vector.load %arg21[%c0_93, %c0_94, %c0_95] : memref<2x8x32xf32, #tpu.memory_space<vmem>>, vector<2x8x32xf32>
      tpu.vector_store %arg21[%c0_93, %c0_94, %c0_95], %196 {strides = array<i32>} : memref<2x8x32xf32, #tpu.memory_space<vmem>>, vector<2x8x32xf32>,
    } else {
    }
    %3 = tpu.iota {dimensions = array<i32: 0>} : vector<8x8xi32>
    %4 = tpu.iota {dimensions = array<i32: 1>} : vector<8x8xi32>
    %5 = arith.cmpi sle, %4, %3 : vector<8x8xi32>
    %c0 = arith.constant 0 : index
    %c0_1 = arith.constant 0 : index
    %c0_2 = arith.constant 0 : index
    %6 = vector.load %arg21[%c0, %c0_1, %c0_2] : memref<2x8x32xf32, #tpu.memory_space<vmem>>, vector<2x8x32xf32>
    %c0_3 = arith.constant 0 : index
    %c0_4 = arith.constant 0 : index
    %c0_5 = arith.constant 0 : index
    %7 = vector.load %arg5[%c0_3, %c0_4, %c0_5] : memref<1x1x32xf32, #tpu.memory_space<vmem>>, vector<1x1x32xf32>
    %8 = vector.shape_cast %7 : vector<1x1x32xf32> to vector<1x32xf32>
    %c0_6 = arith.constant 0 : index
    %c0_7 = arith.constant 0 : index
    %c0_8 = arith.constant 0 : index
    %9 = vector.load %arg6[%c0_6, %c0_7, %c0_8] : memref<1x1x32xf32, #tpu.memory_space<vmem>>, vector<1x1x32xf32>
    %10 = vector.shape_cast %9 : vector<1x1x32xf32> to vector<1x32xf32>
    %cst = arith.constant dense<0.000000e+00> : vector<2x8xf32>
    %11 = vector.multi_reduction <add>, %6, %cst [2] : vector<2x8x32xf32> to vector<2x8xf32>
    %12 = vector.shape_cast %11 : vector<2x8xf32> to vector<2x8x1xf32>
    %cst_9 = arith.constant 3.200000e+01 : f32
    %13 = vector.broadcast %cst_9 : f32 to vector<2x8x1xf32>
    %14 = arith.divf %12, %13 : vector<2x8x1xf32>
    %15 = vector.broadcast %14 : vector<2x8x1xf32> to vector<2x8x32xf32>
    %16 = arith.subf %6, %15 : vector<2x8x32xf32>
    %17 = arith.mulf %16, %16 : vector<2x8x32xf32>
    %cst_10 = arith.constant dense<0.000000e+00> : vector<2x8xf32>
    %18 = vector.multi_reduction <add>, %17, %cst_10 [2] : vector<2x8x32xf32> to vector<2x8xf32>
    %19 = vector.shape_cast %18 : vector<2x8xf32> to vector<2x8x1xf32>
    %cst_11 = arith.constant 3.200000e+01 : f32
    %20 = vector.broadcast %cst_11 : f32 to vector<2x8x1xf32>
    %21 = arith.divf %19, %20 : vector<2x8x1xf32>
    %cst_12 = arith.constant 9.99999974E-6 : f32
    %22 = vector.broadcast %cst_12 : f32 to vector<2x8x1xf32>
    %23 = arith.addf %21, %22 : vector<2x8x1xf32>
    %24 = math.rsqrt %23 : vector<2x8x1xf32>
    %25 = vector.broadcast %24 : vector<2x8x1xf32> to vector<2x8x32xf32>
    %26 = arith.mulf %16, %25 : vector<2x8x32xf32>
    %27 = vector.shape_cast %8 : vector<1x32xf32> to vector<1x1x32xf32>
    %28 = vector.broadcast %27 : vector<1x1x32xf32> to vector<2x8x32xf32>
    %29 = arith.mulf %26, %28 : vector<2x8x32xf32>
    %30 = vector.shape_cast %10 : vector<1x32xf32> to vector<1x1x32xf32>
    %31 = vector.broadcast %30 : vector<1x1x32xf32> to vector<2x8x32xf32>
    %32 = arith.addf %29, %31 : vector<2x8x32xf32>
    %33 = vector.shape_cast %32 : vector<2x8x32xf32> to vector<16x32xf32>
    %34 = arith.truncf %33 : vector<16x32xf32> to vector<16x32xbf16>
    %c0_13 = arith.constant 0 : index
    %c0_14 = arith.constant 0 : index
    %c0_15 = arith.constant 0 : index
    %35 = vector.load %arg7[%c0_13, %c0_14, %c0_15] : memref<1x32x96xbf16, #tpu.memory_space<vmem>>, vector<1x32x96xbf16>
    %36 = vector.shape_cast %35 : vector<1x32x96xbf16> to vector<32x96xbf16>
    %cst_16 = arith.constant dense<0.000000e+00> : vector<16x96xf32>
    %37 = tpu.matmul %34, %36, %cst_16 {dimension_numbers = #tpu.dot_dimension_numbers<[1], [0], [0], [1], [0, 0, 1, 1], [], []>} : vector<16x32xbf16>, vector<32x96xbf16>, vector<16x96xf32> -> vector<16x96xf32>
    %c0_17 = arith.constant 0 : index
    %c0_18 = arith.constant 0 : index
    %c0_19 = arith.constant 0 : index
    %38 = vector.load %arg8[%c0_17, %c0_18, %c0_19] : memref<1x1x96xf32, #tpu.memory_space<vmem>>, vector<1x1x96xf32>
    %39 = vector.shape_cast %38 : vector<1x1x96xf32> to vector<1x96xf32>
    %40 = vector.broadcast %39 : vector<1x96xf32> to vector<16x96xf32>
    %41 = arith.addf %37, %40 : vector<16x96xf32>
    %42 = vector.extract_strided_slice %41 {offsets = [0, 0], sizes = [16, 8], strides = [1, 1]} : vector<16x96xf32> to vector<16x8xf32>
    %cst_20 = arith.constant 0.353553385 : f32
    %43 = vector.broadcast %cst_20 : f32 to vector<16x8xf32>
    %44 = arith.mulf %42, %43 : vector<16x8xf32>
    %45 = vector.shape_cast %44 : vector<16x8xf32> to vector<2x8x8xf32>
    %46 = vector.extract_strided_slice %41 {offsets = [0, 32], sizes = [16, 8], strides = [1, 1]} : vector<16x96xf32> to vector<16x8xf32>
    %47 = vector.shape_cast %46 : vector<16x8xf32> to vector<2x8x8xf32>
    %48 = vector.extract_strided_slice %41 {offsets = [0, 64], sizes = [16, 8], strides = [1, 1]} : vector<16x96xf32> to vector<16x8xf32>
    %49 = vector.shape_cast %48 : vector<16x8xf32> to vector<2x8x8xf32>
    %50 = vector.extract_strided_slice %41 {offsets = [0, 8], sizes = [16, 8], strides = [1, 1]} : vector<16x96xf32> to vector<16x8xf32>
    %cst_21 = arith.constant 0.353553385 : f32
    %51 = vector.broadcast %cst_21 : f32 to vector<16x8xf32>
    %52 = arith.mulf %50, %51 : vector<16x8xf32>
    %53 = vector.shape_cast %52 : vector<16x8xf32> to vector<2x8x8xf32>
    %54 = vector.extract_strided_slice %41 {offsets = [0, 40], sizes = [16, 8], strides = [1, 1]} : vector<16x96xf32> to vector<16x8xf32>
    %55 = vector.shape_cast %54 : vector<16x8xf32> to vector<2x8x8xf32>
    %56 = vector.extract_strided_slice %41 {offsets = [0, 72], sizes = [16, 8], strides = [1, 1]} : vector<16x96xf32> to vector<16x8xf32>
    %57 = vector.shape_cast %56 : vector<16x8xf32> to vector<2x8x8xf32>
    %58 = vector.extract_strided_slice %41 {offsets = [0, 16], sizes = [16, 8], strides = [1, 1]} : vector<16x96xf32> to vector<16x8xf32>
    %cst_22 = arith.constant 0.353553385 : f32
    %59 = vector.broadcast %cst_22 : f32 to vector<16x8xf32>
    %60 = arith.mulf %58, %59 : vector<16x8xf32>
    %61 = vector.shape_cast %60 : vector<16x8xf32> to vector<2x8x8xf32>
    %62 = vector.extract_strided_slice %41 {offsets = [0, 48], sizes = [16, 8], strides = [1, 1]} : vector<16x96xf32> to vector<16x8xf32>
    %63 = vector.shape_cast %62 : vector<16x8xf32> to vector<2x8x8xf32>
    %64 = vector.extract_strided_slice %41 {offsets = [0, 80], sizes = [16, 8], strides = [1, 1]} : vector<16x96xf32> to vector<16x8xf32>
    %65 = vector.shape_cast %64 : vector<16x8xf32> to vector<2x8x8xf32>
    %66 = vector.extract_strided_slice %41 {offsets = [0, 24], sizes = [16, 8], strides = [1, 1]} : vector<16x96xf32> to vector<16x8xf32>
    %cst_23 = arith.constant 0.353553385 : f32
    %67 = vector.broadcast %cst_23 : f32 to vector<16x8xf32>
    %68 = arith.mulf %66, %67 : vector<16x8xf32>
    %69 = vector.shape_cast %68 : vector<16x8xf32> to vector<2x8x8xf32>
    %70 = vector.extract_strided_slice %41 {offsets = [0, 56], sizes = [16, 8], strides = [1, 1]} : vector<16x96xf32> to vector<16x8xf32>
    %71 = vector.shape_cast %70 : vector<16x8xf32> to vector<2x8x8xf32>
    %72 = vector.extract_strided_slice %41 {offsets = [0, 88], sizes = [16, 8], strides = [1, 1]} : vector<16x96xf32> to vector<16x8xf32>
    %73 = vector.shape_cast %72 : vector<16x8xf32> to vector<2x8x8xf32>
    %74 = tpu.concatenate %45, %53, %61, %69 in 0 : vector<2x8x8xf32>, vector<2x8x8xf32>, vector<2x8x8xf32>, vector<2x8x8xf32> -> vector<8x8x8xf32>
    %75 = arith.truncf %74 : vector<8x8x8xf32> to vector<8x8x8xbf16>
    %76 = tpu.concatenate %47, %55, %63, %71 in 0 : vector<2x8x8xf32>, vector<2x8x8xf32>, vector<2x8x8xf32>, vector<2x8x8xf32> -> vector<8x8x8xf32>
    %77 = arith.truncf %76 : vector<8x8x8xf32> to vector<8x8x8xbf16>
    %78 = tpu.concatenate %49, %57, %65, %73 in 0 : vector<2x8x8xf32>, vector<2x8x8xf32>, vector<2x8x8xf32>, vector<2x8x8xf32> -> vector<8x8x8xf32>
    %79 = arith.truncf %78 : vector<8x8x8xf32> to vector<8x8x8xbf16>
    "tpu.trace_start"() <{level = 10 : i32, message = "bqd,bkd->bqk"}> : () -> ()
    %cst_24 = arith.constant dense<0.000000e+00> : vector<8x8x8xf32>
    %80 = tpu.matmul %75, %77, %cst_24 {dimension_numbers = #tpu.dot_dimension_numbers<[2], [2], [1], [1], [0, 0, 0, 1, 1, 1], [0], [0]>} : vector<8x8x8xbf16>, vector<8x8x8xbf16>, vector<8x8x8xf32> -> vector<8x8x8xf32>
    "tpu.trace_stop"() : () -> ()
    %81 = vector.shape_cast %5 : vector<8x8xi1> to vector<1x8x8xi1>
    %cst_25 = arith.constant -1.000000e+09 : f32
    %82 = vector.shape_cast %81 : vector<1x8x8xi1> to vector<1x8x8xi1>
    %83 = vector.broadcast %82 : vector<1x8x8xi1> to vector<8x8x8xi1>
    %84 = vector.broadcast %cst_25 : f32 to vector<8x8x8xf32>
    %85 = arith.select %83, %80, %84 : vector<8x8x8xi1>, vector<8x8x8xf32>
    %cst_26 = arith.constant dense<0xFF800000> : vector<8x8xf32>
    %86 = vector.multi_reduction <maximumf>, %85, %cst_26 [2] : vector<8x8x8xf32> to vector<8x8xf32>
    %87 = vector.shape_cast %86 : vector<8x8xf32> to vector<8x8x1xf32>
    %88 = vector.broadcast %87 : vector<8x8x1xf32> to vector<8x8x8xf32>
    %89 = arith.subf %85, %88 : vector<8x8x8xf32>
    %90 = math.exp %89 : vector<8x8x8xf32>
    %cst_27 = arith.constant dense<0.000000e+00> : vector<8x8xf32>
    %91 = vector.multi_reduction <add>, %90, %cst_27 [2] : vector<8x8x8xf32> to vector<8x8xf32>
    %92 = vector.shape_cast %91 : vector<8x8xf32> to vector<8x8x1xf32>
    %93 = tpu.reciprocal %92 {approx = true} : vector<8x8x1xf32> -> vector<8x8x1xf32>
    %94 = vector.broadcast %93 : vector<8x8x1xf32> to vector<8x8x8xf32>
    %95 = arith.mulf %90, %94 : vector<8x8x8xf32>
    %96 = arith.truncf %95 : vector<8x8x8xf32> to vector<8x8x8xbf16>
    "tpu.trace_start"() <{level = 10 : i32, message = "bqk,bkd->bqd"}> : () -> ()
    %cst_28 = arith.constant dense<0.000000e+00> : vector<8x8x8xf32>
    %97 = tpu.matmul %96, %79, %cst_28 {dimension_numbers = #tpu.dot_dimension_numbers<[2], [1], [1], [2], [0, 0, 0, 1, 1, 2], [0], [0]>} : vector<8x8x8xbf16>, vector<8x8x8xbf16>, vector<8x8x8xf32> -> vector<8x8x8xf32>
    %cst_29 = arith.constant 0.000000e+00 : f32
    "tpu.trace_stop"() : () -> ()
    %98 = vector.broadcast %cst_29 : f32 to vector<16x32xf32>
    %99 = vector.extract_strided_slice %97 {offsets = [0, 0, 0], sizes = [2, 8, 8], strides = [1, 1, 1]} : vector<8x8x8xf32> to vector<2x8x8xf32>
    %100 = vector.shape_cast %99 : vector<2x8x8xf32> to vector<16x8xf32>
    %101 = arith.truncf %100 : vector<16x8xf32> to vector<16x8xbf16>
    %c0_30 = arith.constant 0 : index
    %c0_31 = arith.constant 0 : index
    %c0_32 = arith.constant 0 : index
    %c0_33 = arith.constant 0 : index
    %102 = vector.load %arg9[%c0_30, %c0_31, %c0_32, %c0_33] : memref<1x4x8x32xbf16, #tpu.memory_space<vmem>>, vector<1x1x8x32xbf16>
    %103 = vector.shape_cast %102 : vector<1x1x8x32xbf16> to vector<8x32xbf16>
    %cst_34 = arith.constant dense<0.000000e+00> : vector<16x32xf32>
    %104 = tpu.matmul %101, %103, %cst_34 {dimension_numbers = #tpu.dot_dimension_numbers<[1], [0], [0], [1], [0, 0, 1, 1], [], []>} : vector<16x8xbf16>, vector<8x32xbf16>, vector<16x32xf32> -> vector<16x32xf32>
    %105 = arith.addf %98, %104 : vector<16x32xf32>
    %106 = vector.extract_strided_slice %97 {offsets = [2, 0, 0], sizes = [2, 8, 8], strides = [1, 1, 1]} : vector<8x8x8xf32> to vector<2x8x8xf32>
    %107 = vector.shape_cast %106 : vector<2x8x8xf32> to vector<16x8xf32>
    %108 = arith.truncf %107 : vector<16x8xf32> to vector<16x8xbf16>
    %c0_35 = arith.constant 0 : index
    %c1 = arith.constant 1 : index
    %c0_36 = arith.constant 0 : index
    %c0_37 = arith.constant 0 : index
    %109 = vector.load %arg9[%c0_35, %c1, %c0_36, %c0_37] : memref<1x4x8x32xbf16, #tpu.memory_space<vmem>>, vector<1x1x8x32xbf16>
    %110 = vector.shape_cast %109 : vector<1x1x8x32xbf16> to vector<8x32xbf16>
    %cst_38 = arith.constant dense<0.000000e+00> : vector<16x32xf32>
    %111 = tpu.matmul %108, %110, %cst_38 {dimension_numbers = #tpu.dot_dimension_numbers<[1], [0], [0], [1], [0, 0, 1, 1], [], []>} : vector<16x8xbf16>, vector<8x32xbf16>, vector<16x32xf32> -> vector<16x32xf32>
    %112 = arith.addf %105, %111 : vector<16x32xf32>
    %113 = vector.extract_strided_slice %97 {offsets = [4, 0, 0], sizes = [2, 8, 8], strides = [1, 1, 1]} : vector<8x8x8xf32> to vector<2x8x8xf32>
    %114 = vector.shape_cast %113 : vector<2x8x8xf32> to vector<16x8xf32>
    %115 = arith.truncf %114 : vector<16x8xf32> to vector<16x8xbf16>
    %c0_39 = arith.constant 0 : index
    %c2 = arith.constant 2 : index
    %c0_40 = arith.constant 0 : index
    %c0_41 = arith.constant 0 : index
    %116 = vector.load %arg9[%c0_39, %c2, %c0_40, %c0_41] : memref<1x4x8x32xbf16, #tpu.memory_space<vmem>>, vector<1x1x8x32xbf16>
    %117 = vector.shape_cast %116 : vector<1x1x8x32xbf16> to vector<8x32xbf16>
    %cst_42 = arith.constant dense<0.000000e+00> : vector<16x32xf32>
    %118 = tpu.matmul %115, %117, %cst_42 {dimension_numbers = #tpu.dot_dimension_numbers<[1], [0], [0], [1], [0, 0, 1, 1], [], []>} : vector<16x8xbf16>, vector<8x32xbf16>, vector<16x32xf32> -> vector<16x32xf32>
    %119 = arith.addf %112, %118 : vector<16x32xf32>
    %120 = vector.extract_strided_slice %97 {offsets = [6, 0, 0], sizes = [2, 8, 8], strides = [1, 1, 1]} : vector<8x8x8xf32> to vector<2x8x8xf32>
    %121 = vector.shape_cast %120 : vector<2x8x8xf32> to vector<16x8xf32>
    %122 = arith.truncf %121 : vector<16x8xf32> to vector<16x8xbf16>
    %c0_43 = arith.constant 0 : index
    %c3 = arith.constant 3 : index
    %c0_44 = arith.constant 0 : index
    %c0_45 = arith.constant 0 : index
    %123 = vector.load %arg9[%c0_43, %c3, %c0_44, %c0_45] : memref<1x4x8x32xbf16, #tpu.memory_space<vmem>>, vector<1x1x8x32xbf16>
    %124 = vector.shape_cast %123 : vector<1x1x8x32xbf16> to vector<8x32xbf16>
    %cst_46 = arith.constant dense<0.000000e+00> : vector<16x32xf32>
    %125 = tpu.matmul %122, %124, %cst_46 {dimension_numbers = #tpu.dot_dimension_numbers<[1], [0], [0], [1], [0, 0, 1, 1], [], []>} : vector<16x8xbf16>, vector<8x32xbf16>, vector<16x32xf32> -> vector<16x32xf32>
    %126 = arith.addf %119, %125 : vector<16x32xf32>
    %c0_47 = arith.constant 0 : index
    %c0_48 = arith.constant 0 : index
    %c0_49 = arith.constant 0 : index
    %127 = vector.load %arg10[%c0_47, %c0_48, %c0_49] : memref<1x1x32xf32, #tpu.memory_space<vmem>>, vector<1x1x32xf32>
    %128 = vector.shape_cast %127 : vector<1x1x32xf32> to vector<1x32xf32>
    %129 = vector.broadcast %128 : vector<1x32xf32> to vector<16x32xf32>
    %130 = arith.addf %126, %129 : vector<16x32xf32>
    %131 = vector.shape_cast %130 : vector<16x32xf32> to vector<2x8x32xf32>
    %132 = arith.addf %6, %131 : vector<2x8x32xf32>
    %c0_50 = arith.constant 0 : index
    %c0_51 = arith.constant 0 : index
    %c0_52 = arith.constant 0 : index
    %133 = vector.load %arg21[%c0_50, %c0_51, %c0_52] : memref<2x8x32xf32, #tpu.memory_space<vmem>>, vector<2x8x32xf32>
    tpu.vector_store %arg21[%c0_50, %c0_51, %c0_52], %132 {strides = array<i32>} : memref<2x8x32xf32, #tpu.memory_space<vmem>>, vector<2x8x32xf32>,
    %c0_53 = arith.constant 0 : index
    %c0_54 = arith.constant 0 : index
    %c0_55 = arith.constant 0 : index
    %134 = vector.load %arg21[%c0_53, %c0_54, %c0_55] : memref<2x8x32xf32, #tpu.memory_space<vmem>>, vector<2x8x32xf32>
    %c0_56 = arith.constant 0 : index
    %c0_57 = arith.constant 0 : index
    %c0_58 = arith.constant 0 : index
    %135 = vector.load %arg11[%c0_56, %c0_57, %c0_58] : memref<1x1x32xf32, #tpu.memory_space<vmem>>, vector<1x1x32xf32>
    %136 = vector.shape_cast %135 : vector<1x1x32xf32> to vector<1x32xf32>
    %c0_59 = arith.constant 0 : index
    %c0_60 = arith.constant 0 : index
    %c0_61 = arith.constant 0 : index
    %137 = vector.load %arg12[%c0_59, %c0_60, %c0_61] : memref<1x1x32xf32, #tpu.memory_space<vmem>>, vector<1x1x32xf32>
    %138 = vector.shape_cast %137 : vector<1x1x32xf32> to vector<1x32xf32>
    %cst_62 = arith.constant dense<0.000000e+00> : vector<2x8xf32>
    %139 = vector.multi_reduction <add>, %134, %cst_62 [2] : vector<2x8x32xf32> to vector<2x8xf32>
    %140 = vector.shape_cast %139 : vector<2x8xf32> to vector<2x8x1xf32>
    %cst_63 = arith.constant 3.200000e+01 : f32
    %141 = vector.broadcast %cst_63 : f32 to vector<2x8x1xf32>
    %142 = arith.divf %140, %141 : vector<2x8x1xf32>
    %143 = vector.broadcast %142 : vector<2x8x1xf32> to vector<2x8x32xf32>
    %144 = arith.subf %134, %143 : vector<2x8x32xf32>
    %145 = arith.mulf %144, %144 : vector<2x8x32xf32>
    %cst_64 = arith.constant dense<0.000000e+00> : vector<2x8xf32>
    %146 = vector.multi_reduction <add>, %145, %cst_64 [2] : vector<2x8x32xf32> to vector<2x8xf32>
    %147 = vector.shape_cast %146 : vector<2x8xf32> to vector<2x8x1xf32>
    %cst_65 = arith.constant 3.200000e+01 : f32
    %148 = vector.broadcast %cst_65 : f32 to vector<2x8x1xf32>
    %149 = arith.divf %147, %148 : vector<2x8x1xf32>
    %cst_66 = arith.constant 9.99999974E-6 : f32
    %150 = vector.broadcast %cst_66 : f32 to vector<2x8x1xf32>
    %151 = arith.addf %149, %150 : vector<2x8x1xf32>
    %152 = math.rsqrt %151 : vector<2x8x1xf32>
    %153 = vector.broadcast %152 : vector<2x8x1xf32> to vector<2x8x32xf32>
    %154 = arith.mulf %144, %153 : vector<2x8x32xf32>
    %155 = vector.shape_cast %136 : vector<1x32xf32> to vector<1x1x32xf32>
    %156 = vector.broadcast %155 : vector<1x1x32xf32> to vector<2x8x32xf32>
    %157 = arith.mulf %154, %156 : vector<2x8x32xf32>
    %158 = vector.shape_cast %138 : vector<1x32xf32> to vector<1x1x32xf32>
    %159 = vector.broadcast %158 : vector<1x1x32xf32> to vector<2x8x32xf32>
    %160 = arith.addf %157, %159 : vector<2x8x32xf32>
    %161 = vector.shape_cast %160 : vector<2x8x32xf32> to vector<16x32xf32>
    %162 = arith.truncf %161 : vector<16x32xf32> to vector<16x32xbf16>
    %c0_67 = arith.constant 0 : index
    %c0_68 = arith.constant 0 : index
    %c0_69 = arith.constant 0 : index
    %163 = vector.load %arg13[%c0_67, %c0_68, %c0_69] : memref<1x32x128xbf16, #tpu.memory_space<vmem>>, vector<1x32x128xbf16>
    %164 = vector.shape_cast %163 : vector<1x32x128xbf16> to vector<32x128xbf16>
    %cst_70 = arith.constant dense<0.000000e+00> : vector<16x128xf32>
    %165 = tpu.matmul %162, %164, %cst_70 {dimension_numbers = #tpu.dot_dimension_numbers<[1], [0], [0], [1], [0, 0, 1, 1], [], []>} : vector<16x32xbf16>, vector<32x128xbf16>, vector<16x128xf32> -> vector<16x128xf32>
    %c0_71 = arith.constant 0 : index
    %c0_72 = arith.constant 0 : index
    %c0_73 = arith.constant 0 : index
    %166 = vector.load %arg14[%c0_71, %c0_72, %c0_73] : memref<1x1x128xf32, #tpu.memory_space<vmem>>, vector<1x1x128xf32>
    %167 = vector.shape_cast %166 : vector<1x1x128xf32> to vector<1x128xf32>
    %168 = vector.broadcast %167 : vector<1x128xf32> to vector<16x128xf32>
    %169 = arith.addf %165, %168 : vector<16x128xf32>
    %cst_74 = arith.constant -1.702000e+00 : f32
    %170 = vector.broadcast %cst_74 : f32 to vector<16x128xf32>
    %171 = arith.mulf %170, %169 : vector<16x128xf32>
    %172 = math.exp %171 : vector<16x128xf32>
    %cst_75 = arith.constant 1.000000e+00 : f32
    %173 = vector.broadcast %cst_75 : f32 to vector<16x128xf32>
    %174 = arith.addf %173, %172 : vector<16x128xf32>
    %cst_76 = arith.constant 1.000000e+00 : f32
    %175 = vector.broadcast %cst_76 : f32 to vector<16x128xf32>
    %176 = arith.divf %175, %174 : vector<16x128xf32>
    %177 = arith.mulf %169, %176 : vector<16x128xf32>
    %178 = arith.truncf %177 : vector<16x128xf32> to vector<16x128xbf16>
    %c0_77 = arith.constant 0 : index
    %c0_78 = arith.constant 0 : index
    %c0_79 = arith.constant 0 : index
    %179 = vector.load %arg15[%c0_77, %c0_78, %c0_79] : memref<1x128x32xbf16, #tpu.memory_space<vmem>>, vector<1x128x32xbf16>
    %180 = vector.shape_cast %179 : vector<1x128x32xbf16> to vector<128x32xbf16>
    %cst_80 = arith.constant dense<0.000000e+00> : vector<16x32xf32>
    %181 = tpu.matmul %178, %180, %cst_80 {dimension_numbers = #tpu.dot_dimension_numbers<[1], [0], [0], [1], [0, 0, 1, 1], [], []>} : vector<16x128xbf16>, vector<128x32xbf16>, vector<16x32xf32> -> vector<16x32xf32>
    %c0_81 = arith.constant 0 : index
    %c0_82 = arith.constant 0 : index
    %c0_83 = arith.constant 0 : index
    %182 = vector.load %arg16[%c0_81, %c0_82, %c0_83] : memref<1x1x32xf32, #tpu.memory_space<vmem>>, vector<1x1x32xf32>
    %183 = vector.shape_cast %182 : vector<1x1x32xf32> to vector<1x32xf32>
    %184 = vector.broadcast %183 : vector<1x32xf32> to vector<16x32xf32>
    %185 = arith.addf %181, %184 : vector<16x32xf32>
    %186 = vector.shape_cast %185 : vector<16x32xf32> to vector<2x8x32xf32>
    %187 = arith.addf %134, %186 : vector<2x8x32xf32>
    %c0_84 = arith.constant 0 : index
    %c0_85 = arith.constant 0 : index
    %c0_86 = arith.constant 0 : index
    %188 = vector.load %arg21[%c0_84, %c0_85, %c0_86] : memref<2x8x32xf32, #tpu.memory_space<vmem>>, vector<2x8x32xf32>
    tpu.vector_store %arg21[%c0_84, %c0_85, %c0_86], %187 {strides = array<i32>} : memref<2x8x32xf32, #tpu.memory_space<vmem>>, vector<2x8x32xf32>,
    %c1_i32 = arith.constant 1 : i32
    %189 = arith.cmpi eq, %arg1, %c1_i32 : i32
    %190 = arith.extui %189 : i1 to i32
    %c0_i32_87 = arith.constant 0 : i32
    %191 = arith.cmpi ne, %190, %c0_i32_87 : i32
    scf.if %191 {
      %c2_i32 = arith.constant 2 : i32
      %192 = arith.muli %arg0, %c2_i32 : i32
      %c0_i32_88 = arith.constant 0 : i32
      %193 = arith.addi %192, %c0_i32_88 : i32
      %194 = arith.index_cast %193 : i32 to index
      %195 = memref.load %arg2[%194] : memref<2xi32, #tpu.memory_space<smem>>
      %c0_89 = arith.constant 0 : index
      %196 = arith.index_cast %195 : i32 to index
      %c0_90 = arith.constant 0 : index
      %197 = vector.load %arg21[%c0_89, %196, %c0_90] : memref<2x8x32xf32, #tpu.memory_space<vmem>>, vector<1x1x32xf32>
      %198 = vector.shape_cast %197 : vector<1x1x32xf32> to vector<1x32xf32>
      %c2_i32_91 = arith.constant 2 : i32
      %199 = arith.muli %arg0, %c2_i32_91 : i32
      %c1_i32_92 = arith.constant 1 : i32
      %200 = arith.addi %199, %c1_i32_92 : i32
      %201 = arith.index_cast %200 : i32 to index
      %202 = memref.load %arg2[%201] : memref<2xi32, #tpu.memory_space<smem>>
      %c1_93 = arith.constant 1 : index
      %203 = arith.index_cast %202 : i32 to index
      %c0_94 = arith.constant 0 : index
      %204 = vector.load %arg21[%c1_93, %203, %c0_94] : memref<2x8x32xf32, #tpu.memory_space<vmem>>, vector<1x1x32xf32>
      %205 = vector.shape_cast %204 : vector<1x1x32xf32> to vector<1x32xf32>
      %206 = tpu.concatenate %198, %205 in 0 : vector<1x32xf32>, vector<1x32xf32> -> vector<2x32xf32>
      %c0_95 = arith.constant 0 : index
      %c0_96 = arith.constant 0 : index
      %207 = vector.load %arg17[%c0_95, %c0_96] : memref<1x32xf32, #tpu.memory_space<vmem>>, vector<1x32xf32>
      %c0_97 = arith.constant 0 : index
      %c0_98 = arith.constant 0 : index
      %208 = vector.load %arg18[%c0_97, %c0_98] : memref<1x32xf32, #tpu.memory_space<vmem>>, vector<1x32xf32>
      %cst_99 = arith.constant dense<0.000000e+00> : vector<2xf32>
      %209 = vector.multi_reduction <add>, %206, %cst_99 [1] : vector<2x32xf32> to vector<2xf32>
      %210 = vector.shape_cast %209 : vector<2xf32> to vector<2x1xf32>
      %cst_100 = arith.constant 3.200000e+01 : f32
      %211 = vector.broadcast %cst_100 : f32 to vector<2x1xf32>
      %212 = arith.divf %210, %211 : vector<2x1xf32>
      %213 = vector.broadcast %212 : vector<2x1xf32> to vector<2x32xf32>
      %214 = arith.subf %206, %213 : vector<2x32xf32>
      %215 = arith.mulf %214, %214 : vector<2x32xf32>
      %cst_101 = arith.constant dense<0.000000e+00> : vector<2xf32>
      %216 = vector.multi_reduction <add>, %215, %cst_101 [1] : vector<2x32xf32> to vector<2xf32>
      %217 = vector.shape_cast %216 : vector<2xf32> to vector<2x1xf32>
      %cst_102 = arith.constant 3.200000e+01 : f32
      %218 = vector.broadcast %cst_102 : f32 to vector<2x1xf32>
      %219 = arith.divf %217, %218 : vector<2x1xf32>
      %cst_103 = arith.constant 9.99999974E-6 : f32
      %220 = vector.broadcast %cst_103 : f32 to vector<2x1xf32>
      %221 = arith.addf %219, %220 : vector<2x1xf32>
      %222 = math.rsqrt %221 : vector<2x1xf32>
      %223 = vector.broadcast %222 : vector<2x1xf32> to vector<2x32xf32>
      %224 = arith.mulf %214, %223 : vector<2x32xf32>
      %225 = vector.broadcast %207 : vector<1x32xf32> to vector<2x32xf32>
      %226 = arith.mulf %224, %225 : vector<2x32xf32>
      %227 = vector.broadcast %208 : vector<1x32xf32> to vector<2x32xf32>
      %228 = arith.addf %226, %227 : vector<2x32xf32>
      %229 = arith.truncf %228 : vector<2x32xf32> to vector<2x32xbf16>
      %c0_104 = arith.constant 0 : index
      %c0_105 = arith.constant 0 : index
      %230 = vector.load %arg19[%c0_104, %c0_105] : memref<32x128xbf16, #tpu.memory_space<vmem>>, vector<32x128xbf16>
      %cst_106 = arith.constant dense<0.000000e+00> : vector<2x128xf32>
      %231 = tpu.matmul %229, %230, %cst_106 {dimension_numbers = #tpu.dot_dimension_numbers<[1], [0], [0], [1], [0, 0, 1, 1], [], []>} : vector<2x32xbf16>, vector<32x128xbf16>, vector<2x128xf32> -> vector<2x128xf32>
      %c0_107 = arith.constant 0 : index
      %c0_108 = arith.constant 0 : index
      %232 = vector.load %arg20[%c0_107, %c0_108] : memref<2x128xf32, #tpu.memory_space<vmem>>, vector<2x128xf32>
      tpu.vector_store %arg20[%c0_107, %c0_108], %231 {strides = array<i32>} : memref<2x128xf32, #tpu.memory_space<vmem>>, vector<2x128xf32>,
    } else {
    }
    return
  }
  func.func @transform_0(%arg0: i32, %arg1: i32, %arg2: memref<2xi32, #tpu.memory_space<smem>>) -> (i32, i32, i32) {
    %c0_i32 = arith.constant 0 : i32
    %c0_i32_0 = arith.constant 0 : i32
    %c0_i32_1 = arith.constant 0 : i32
    return %arg0, %c0_i32, %c0_i32_0 : i32, i32, i32
  }
  func.func @transform_1(%arg0: i32, %arg1: i32, %arg2: memref<2xi32, #tpu.memory_space<smem>>) -> (i32, i32) {
    %c0_i32 = arith.constant 0 : i32
    %c0_i32_0 = arith.constant 0 : i32
    %c0_i32_1 = arith.constant 0 : i32
    return %c0_i32, %c0_i32_0 : i32, i32
  }
  func.func @transform_2(%arg0: i32, %arg1: i32, %arg2: memref<2xi32, #tpu.memory_space<smem>>) -> (i32, i32, i32) {
    %c0_i32 = arith.constant 0 : i32
    %c0_i32_0 = arith.constant 0 : i32
    %c0_i32_1 = arith.constant 0 : i32
    return %arg1, %c0_i32, %c0_i32_0 : i32, i32, i32
  }
  func.func @transform_3(%arg0: i32, %arg1: i32, %arg2: memref<2xi32, #tpu.memory_space<smem>>) -> (i32, i32, i32) {
    %c0_i32 = arith.constant 0 : i32
    %c0_i32_0 = arith.constant 0 : i32
    %c0_i32_1 = arith.constant 0 : i32
    return %arg1, %c0_i32, %c0_i32_0 : i32, i32, i32
  }
  func.func @transform_4(%arg0: i32, %arg1: i32, %arg2: memref<2xi32, #tpu.memory_space<smem>>) -> (i32, i32, i32) {
    %c0_i32 = arith.constant 0 : i32
    %c0_i32_0 = arith.constant 0 : i32
    %c0_i32_1 = arith.constant 0 : i32
    return %arg1, %c0_i32, %c0_i32_0 : i32, i32, i32
  }
  func.func @transform_5(%arg0: i32, %arg1: i32, %arg2: memref<2xi32, #tpu.memory_space<smem>>) -> (i32, i32, i32) {
    %c0_i32 = arith.constant 0 : i32
    %c0_i32_0 = arith.constant 0 : i32
    %c0_i32_1 = arith.constant 0 : i32
    return %arg1, %c0_i32, %c0_i32_0 : i32, i32, i32
  }
  func.func @transform_6(%arg0: i32, %arg1: i32, %arg2: memref<2xi32, #tpu.memory_space<smem>>) -> (i32, i32, i32, i32) {
    %c0_i32 = arith.constant 0 : i32
    %c0_i32_0 = arith.constant 0 : i32
    %c0_i32_1 = arith.constant 0 : i32
    %c0_i32_2 = arith.constant 0 : i32
    return %arg1, %c0_i32, %c0_i32_0, %c0_i32_1 : i32, i32, i32, i32
  }
  func.func @transform_7(%arg0: i32, %arg1: i32, %arg2: memref<2xi32, #tpu.memory_space<smem>>) -> (i32, i32, i32) {
    %c0_i32 = arith.constant 0 : i32
    %c0_i32_0 = arith.constant 0 : i32
    %c0_i32_1 = arith.constant 0 : i32
    return %arg1, %c0_i32, %c0_i32_0 : i32, i32, i32
  }
  func.func @transform_8(%arg0: i32, %arg1: i32, %arg2: memref<2xi32, #tpu.memory_space<smem>>) -> (i32, i32, i32) {
    %c0_i32 = arith.constant 0 : i32
    %c0_i32_0 = arith.constant 0 : i32
    %c0_i32_1 = arith.constant 0 : i32
    return %arg1, %c0_i32, %c0_i32_0 : i32, i32, i32
  }
  func.func @transform_9(%arg0: i32, %arg1: i32, %arg2: memref<2xi32, #tpu.memory_space<smem>>) -> (i32, i32, i32) {
    %c0_i32 = arith.constant 0 : i32
    %c0_i32_0 = arith.constant 0 : i32
    %c0_i32_1 = arith.constant 0 : i32
    return %arg1, %c0_i32, %c0_i32_0 : i32, i32, i32
  }
  func.func @transform_10(%arg0: i32, %arg1: i32, %arg2: memref<2xi32, #tpu.memory_space<smem>>) -> (i32, i32, i32) {
    %c0_i32 = arith.constant 0 : i32
    %c0_i32_0 = arith.constant 0 : i32
    %c0_i32_1 = arith.constant 0 : i32
    return %arg1, %c0_i32, %c0_i32_0 : i32, i32, i32
  }
  func.func @transform_11(%arg0: i32, %arg1: i32, %arg2: memref<2xi32, #tpu.memory_space<smem>>) -> (i32, i32, i32) {
    %c0_i32 = arith.constant 0 : i32
    %c0_i32_0 = arith.constant 0 : i32
    %c0_i32_1 = arith.constant 0 : i32
    return %arg1, %c0_i32, %c0_i32_0 : i32, i32, i32
  }
  func.func @transform_12(%arg0: i32, %arg1: i32, %arg2: memref<2xi32, #tpu.memory_space<smem>>) -> (i32, i32, i32) {
    %c0_i32 = arith.constant 0 : i32
    %c0_i32_0 = arith.constant 0 : i32
    %c0_i32_1 = arith.constant 0 : i32
    return %arg1, %c0_i32, %c0_i32_0 : i32, i32, i32
  }
  func.func @transform_13(%arg0: i32, %arg1: i32, %arg2: memref<2xi32, #tpu.memory_space<smem>>) -> (i32, i32, i32) {
    %c0_i32 = arith.constant 0 : i32
    %c0_i32_0 = arith.constant 0 : i32
    %c0_i32_1 = arith.constant 0 : i32
    return %arg1, %c0_i32, %c0_i32_0 : i32, i32, i32
  }
  func.func @transform_14(%arg0: i32, %arg1: i32, %arg2: memref<2xi32, #tpu.memory_space<smem>>) -> (i32, i32) {
    %c0_i32 = arith.constant 0 : i32
    %c0_i32_0 = arith.constant 0 : i32
    %c0_i32_1 = arith.constant 0 : i32
    return %c0_i32, %c0_i32_0 : i32, i32
  }
  func.func @transform_15(%arg0: i32, %arg1: i32, %arg2: memref<2xi32, #tpu.memory_space<smem>>) -> (i32, i32) {
    %c0_i32 = arith.constant 0 : i32
    %c0_i32_0 = arith.constant 0 : i32
    %c0_i32_1 = arith.constant 0 : i32
    return %c0_i32, %c0_i32_0 : i32, i32
  }
  func.func @transform_16(%arg0: i32, %arg1: i32, %arg2: memref<2xi32, #tpu.memory_space<smem>>) -> (i32, i32) {
    %c0_i32 = arith.constant 0 : i32
    %c0_i32_0 = arith.constant 0 : i32
    %c0_i32_1 = arith.constant 0 : i32
    return %c0_i32, %c0_i32_0 : i32, i32
  }
  func.func @transform_17(%arg0: i32, %arg1: i32, %arg2: memref<2xi32, #tpu.memory_space<smem>>) -> (i32, i32) {
    %c0_i32 = arith.constant 0 : i32
    %c0_i32_0 = arith.constant 0 : i32
    return %arg0, %c0_i32 : i32, i32
  }
}

</mosaic_0001>

<llo_original>
// kernel: tpu_custom_call.1
$region0: #{tpu_custom_call.1}
  #allocation0 [shape = 'u32[]', space=smem, size = 0x4, offset = 0x4, fixed_abs, tag = 'smem constant byte address 0x4 - core index']
  #allocation1 [shape = 'u32[144,128]{1,0:T(1,128)}', space=vmem, size = 0x12000, scoped, tag = 'internal scratch']
  #allocation2 [shape = 'f32[2,8,32]{2,1,0:T(8,128)}', space=vmem, size = 0x2000, scoped, tag = 'scratch operand']
  #allocation3 [shape = 's32[1]{0}', space=sflag, size = 0x4, scoped, tag = 'scoped memory for tpu_custom_call.1']
  #allocation4 [shape = 'u8[512]{0}', space=smem, size = 0x200, scoped, tag = 'prefetched SMEM operand 0']
  %s0 = inlined_call_operand.vmem [shape: s32[2], index: 0, kind: input, shape index: {}]
  %s1 = inlined_call_operand.vmem [shape: f32[2,8,32], index: 1, kind: input, shape index: {}]
  %s2 = inlined_call_operand.vmem [shape: f32[8,32], index: 2, kind: input, shape index: {}]
  %s3 = inlined_call_operand.vmem [shape: f32[2,1,32], index: 3, kind: input, shape index: {}]
  %s4 = inlined_call_operand.vmem [shape: f32[2,1,32], index: 4, kind: input, shape index: {}]
  %s5 = inlined_call_operand.vmem [shape: bf16[2,32,96], index: 5, kind: input, shape index: {}]
  %s6 = inlined_call_operand.vmem [shape: f32[2,1,96], index: 6, kind: input, shape index: {}]
  %s7 = inlined_call_operand.vmem [shape: bf16[2,4,8,32], index: 7, kind: input, shape index: {}]
  %s8 = inlined_call_operand.vmem [shape: f32[2,1,32], index: 8, kind: input, shape index: {}]
  %s9 = inlined_call_operand.vmem [shape: f32[2,1,32], index: 9, kind: input, shape index: {}]
  %s10 = inlined_call_operand.vmem [shape: f32[2,1,32], index: 10, kind: input, shape index: {}]
  %s11 = inlined_call_operand.vmem [shape: bf16[2,32,128], index: 11, kind: input, shape index: {}]
  %s12 = inlined_call_operand.vmem [shape: f32[2,1,128], index: 12, kind: input, shape index: {}]
  %s13 = inlined_call_operand.vmem [shape: bf16[2,128,32], index: 13, kind: input, shape index: {}]
  %s14 = inlined_call_operand.vmem [shape: f32[2,1,32], index: 14, kind: input, shape index: {}]
  %s15 = inlined_call_operand.vmem [shape: f32[1,32], index: 15, kind: input, shape index: {}]
  %s16 = inlined_call_operand.vmem [shape: f32[1,32], index: 16, kind: input, shape index: {}]
  %s17 = inlined_call_operand.vmem [shape: bf16[32,128], index: 17, kind: input, shape index: {}]
  %s18 = inlined_call_operand.hbm [shape: f32[2,128], index: 18, kind: output, shape index: {}]
  %s19 = sld [smem:[#allocation0]]
  $region109: #{tpu_custom_call.1} parent=0
    _
  %s21 = ssub.s32 1, %s19
  %s22 = scalar_select 0, %s21, %s19
  %s23 = sshll.u32 %s0, 4
  %s24 = int_to_ptr.vmem [resolvable:$true] %s23
  %26 = dma.vmem_to_smem %s24, 16, [#allocation4], [#allocation3]
  %27 = dma.done [#allocation3], 16
  %28 = sfence
  $region1: #{tpu_custom_call.1} parent=0
    #allocation5 [shape = 'u8[1024]{0}', space=vmem, size = 0x400, scoped, tag = 'output window, operand 0, single buffered']
    #allocation6 [shape = 's32[2]{0}', space=sflag, size = 0x8, scoped, tag = 'scoped memory for tpu_custom_call.1']
    %29 = vsyncpa [#allocation6], 0
    loop: start=0, step=1, limit=4
    $region2: #{tpu_custom_call.1} parent=1 // loop_pre_header
      _
    $region3: #{tpu_custom_call.1} parent=1 // loop_header
      %s31 = sphi 0, %s35
      %p32 = scmp.ge.s32.totalorder %s31, 4
      %s38 = sphi 0, %s50
      %s39 = sphi 0, %s46
      %s40 = sphi 0, %s38
      %s41 = sphi 0, %s39
      %s42 = sphi 0, %s40
      %s43 = sphi 0, %s41
      %s53 = sphi 0, %s55
      %s56 = sphi 0, %s53
      %s57 = sphi 0, %s56
      %s73 = sphi 0, %s57
      %s77 = sphi 0, %s77
      %s79 = sphi 0, %s77
      %s80 = sphi 0, %s79
      %s94 = sphi 0, %s80
      %s100 = sphi 0, %s102
      %s103 = sphi 0, %s100
      %s104 = sphi 0, %s103
      %s120 = sphi 0, %s104
      %s126 = sphi 0, %s128
      %s129 = sphi 0, %s126
      %s130 = sphi 0, %s129
      %s146 = sphi 0, %s130
      %s152 = sphi 0, %s154
      %s155 = sphi 0, %s152
      %s156 = sphi 0, %s155
      %s172 = sphi 0, %s156
      %s178 = sphi 0, %s180
      %s181 = sphi 0, %s178
      %s182 = sphi 0, %s181
      %s198 = sphi 0, %s182
      %s204 = sphi 0, %s206
      %s207 = sphi 0, %s204
      %s208 = sphi 0, %s207
      %s224 = sphi 0, %s208
      %s230 = sphi 0, %s232
      %s233 = sphi 0, %s230
      %s234 = sphi 0, %s233
      %s250 = sphi 0, %s234
      %s256 = sphi 0, %s258
      %s259 = sphi 0, %s256
      %s260 = sphi 0, %s259
      %s276 = sphi 0, %s260
      %s282 = sphi 0, %s284
      %s285 = sphi 0, %s282
      %s286 = sphi 0, %s285
      %s302 = sphi 0, %s286
      %s308 = sphi 0, %s310
      %s311 = sphi 0, %s308
      %s312 = sphi 0, %s311
      %s328 = sphi 0, %s312
      %s334 = sphi 0, %s336
      %s337 = sphi 0, %s334
      %s338 = sphi 0, %s337
      %s354 = sphi 0, %s338
      %s360 = sphi 0, %s362
      %s363 = sphi 0, %s360
      %s364 = sphi 0, %s363
      %s380 = sphi 0, %s364
      %s386 = sphi 0, %s388
      %s389 = sphi 0, %s386
      %s390 = sphi 0, %s389
      %s406 = sphi 0, %s390
      %s410 = sphi 0, %s410
      %s412 = sphi 0, %s410
      %s413 = sphi 0, %s412
      %s427 = sphi 0, %s413
      %s431 = sphi 0, %s431
      %s433 = sphi 0, %s431
      %s434 = sphi 0, %s433
      %s448 = sphi 0, %s434
      %s452 = sphi 0, %s452
      %s454 = sphi 0, %s452
      %s455 = sphi 0, %s454
      %s469 = sphi 0, %s455
      %s475 = sphi 0, %s477
      %s478 = sphi 0, %s475
      %s479 = sphi 0, %s478
      %s495 = sphi 0, %s479
    $region4: #{tpu_custom_call.1} parent=1 // loop_header_branch
      %34 = sbr.rel (%p32) target = $region8
    $region5: #{tpu_custom_call.1} parent=1 // loop_body
      %s36 = ssub.s32 %s31, 1
      %s37 = ssub.s32 %s31, 2
      %s44 = sadd.s32 1, %s39
      %p45 = scmp.ge.s32.totalorder %s44, 2
      %s46 = scalar_select %p45, 0, %s44
      %s47 = sadd.s32 1, %s38
      %s48 = scalar_select %p45, %s47, %s38
      %p49 = scmp.ge.s32.totalorder %s48, 1
      %s50 = scalar_select %p49, 0, %s48
      %s51 = ssub.s32 %s38, %s50
      %p52 = scmp.eq.s32.totalorder %s51, 0
      %s54 = sadd.s32 %s53, 1
      %s55 = scalar_select %p52, %s53, %s54
      %p58 = pneg %p52
      %p59 = scmp.eq.s32.totalorder %s31, 1
      %p60 = por %p58, %p59
      %p61 = scmp.ne.s32.totalorder %s53, %s56
      %p62 = scmp.eq.s32.totalorder %s31, 0
      %p63 = por %p61, %p62
      %p64 = scmp.ne.s32.totalorder %s53, %s56
      %p65 = scmp.eq.s32.totalorder %s36, 1
      %p66 = por %p64, %p65
      %p67 = scmp.ne.s32.totalorder %s56, %s57
      %p68 = scmp.eq.s32.totalorder %s36, 0
      %p69 = por %p67, %p68
      %p70 = scmp.ne.s32.totalorder %s56, %s57
      %p71 = scmp.eq.s32.totalorder %s37, 1
      %p72 = por %p70, %p71
      %p74 = scmp.ne.s32.totalorder %s57, %s73
      %p75 = scmp.eq.s32.totalorder %s37, 0
      %p76 = por %p74, %p75
      %s78 = sadd.s32 %s77, 1
      %p81 = scmp.eq.s32.totalorder %s31, 1
      %p82 = scmp.ne.s32.totalorder %s77, %s79
      %p83 = scmp.eq.s32.totalorder %s31, 0
      %p84 = por %p82, %p83
      %p85 = scmp.ne.s32.totalorder %s77, %s79
      %p86 = scmp.eq.s32.totalorder %s36, 1
      %p87 = por %p85, %p86
      %p88 = scmp.ne.s32.totalorder %s79, %s80
      %p89 = scmp.eq.s32.totalorder %s36, 0
      %p90 = por %p88, %p89
      %p91 = scmp.ne.s32.totalorder %s79, %s80
      %p92 = scmp.eq.s32.totalorder %s37, 1
      %p93 = por %p91, %p92
      %p95 = scmp.ne.s32.totalorder %s80, %s94
      %p96 = scmp.eq.s32.totalorder %s37, 0
      %p97 = por %p95, %p96
      %s98 = ssub.s32 %s39, %s46
      %p99 = scmp.eq.s32.totalorder %s98, 0
      %s101 = sadd.s32 %s100, 1
      %s102 = scalar_select %p99, %s100, %s101
      %p105 = pneg %p99
      %p106 = scmp.eq.s32.totalorder %s31, 1
      %p107 = por %p105, %p106
      %p108 = scmp.ne.s32.totalorder %s100, %s103
      %p109 = scmp.eq.s32.totalorder %s31, 0
      %p110 = por %p108, %p109
      %p111 = scmp.ne.s32.totalorder %s100, %s103
      %p112 = scmp.eq.s32.totalorder %s36, 1
      %p113 = por %p111, %p112
      %p114 = scmp.ne.s32.totalorder %s103, %s104
      %p115 = scmp.eq.s32.totalorder %s36, 0
      %p116 = por %p114, %p115
      %p117 = scmp.ne.s32.totalorder %s103, %s104
      %p118 = scmp.eq.s32.totalorder %s37, 1
      %p119 = por %p117, %p118
      %p121 = scmp.ne.s32.totalorder %s104, %s120
      %p122 = scmp.eq.s32.totalorder %s37, 0
      %p123 = por %p121, %p122
      %s124 = ssub.s32 %s39, %s46
      %p125 = scmp.eq.s32.totalorder %s124, 0
      %s127 = sadd.s32 %s126, 1
      %s128 = scalar_select %p125, %s126, %s127
      %p131 = pneg %p125
      %p132 = scmp.eq.s32.totalorder %s31, 1
      %p133 = por %p131, %p132
      %p134 = scmp.ne.s32.totalorder %s126, %s129
      %p135 = scmp.eq.s32.totalorder %s31, 0
      %p136 = por %p134, %p135
      %p137 = scmp.ne.s32.totalorder %s126, %s129
      %p138 = scmp.eq.s32.totalorder %s36, 1
      %p139 = por %p137, %p138
      %p140 = scmp.ne.s32.totalorder %s129, %s130
      %p141 = scmp.eq.s32.totalorder %s36, 0
      %p142 = por %p140, %p141
      %p143 = scmp.ne.s32.totalorder %s129, %s130
      %p144 = scmp.eq.s32.totalorder %s37, 1
      %p145 = por %p143, %p144
      %p147 = scmp.ne.s32.totalorder %s130, %s146
      %p148 = scmp.eq.s32.totalorder %s37, 0
      %p149 = por %p147, %p148
      %s150 = ssub.s32 %s39, %s46
      %p151 = scmp.eq.s32.totalorder %s150, 0
      %s153 = sadd.s32 %s152, 1
      %s154 = scalar_select %p151, %s152, %s153
      %p157 = pneg %p151
      %p158 = scmp.eq.s32.totalorder %s31, 1
      %p159 = por %p157, %p158
      %p160 = scmp.ne.s32.totalorder %s152, %s155
      %p161 = scmp.eq.s32.totalorder %s31, 0
      %p162 = por %p160, %p161
      %p163 = scmp.ne.s32.totalorder %s152, %s155
      %p164 = scmp.eq.s32.totalorder %s36, 1
      %p165 = por %p163, %p164
      %p166 = scmp.ne.s32.totalorder %s155, %s156
      %p167 = scmp.eq.s32.totalorder %s36, 0
      %p168 = por %p166, %p167
      %p169 = scmp.ne.s32.totalorder %s155, %s156
      %p170 = scmp.eq.s32.totalorder %s37, 1
      %p171 = por %p169, %p170
      %p173 = scmp.ne.s32.totalorder %s156, %s172
      %p174 = scmp.eq.s32.totalorder %s37, 0
      %p175 = por %p173, %p174
      %s176 = ssub.s32 %s39, %s46
      %p177 = scmp.eq.s32.totalorder %s176, 0
      %s179 = sadd.s32 %s178, 1
      %s180 = scalar_select %p177, %s178, %s179
      %p183 = pneg %p177
      %p184 = scmp.eq.s32.totalorder %s31, 1
      %p185 = por %p183, %p184
      %p186 = scmp.ne.s32.totalorder %s178, %s181
      %p187 = scmp.eq.s32.totalorder %s31, 0
      %p188 = por %p186, %p187
      %p189 = scmp.ne.s32.totalorder %s178, %s181
      %p190 = scmp.eq.s32.totalorder %s36, 1
      %p191 = por %p189, %p190
      %p192 = scmp.ne.s32.totalorder %s181, %s182
      %p193 = scmp.eq.s32.totalorder %s36, 0
      %p194 = por %p192, %p193
      %p195 = scmp.ne.s32.totalorder %s181, %s182
      %p196 = scmp.eq.s32.totalorder %s37, 1
      %p197 = por %p195, %p196
      %p199 = scmp.ne.s32.totalorder %s182, %s198
      %p200 = scmp.eq.s32.totalorder %s37, 0
      %p201 = por %p199, %p200
      %s202 = ssub.s32 %s39, %s46
      %p203 = scmp.eq.s32.totalorder %s202, 0
      %s205 = sadd.s32 %s204, 1
      %s206 = scalar_select %p203, %s204, %s205
      %p209 = pneg %p203
      %p210 = scmp.eq.s32.totalorder %s31, 1
      %p211 = por %p209, %p210
      %p212 = scmp.ne.s32.totalorder %s204, %s207
      %p213 = scmp.eq.s32.totalorder %s31, 0
      %p214 = por %p212, %p213
      %p215 = scmp.ne.s32.totalorder %s204, %s207
      %p216 = scmp.eq.s32.totalorder %s36, 1
      %p217 = por %p215, %p216
      %p218 = scmp.ne.s32.totalorder %s207, %s208
      %p219 = scmp.eq.s32.totalorder %s36, 0
      %p220 = por %p218, %p219
      %p221 = scmp.ne.s32.totalorder %s207, %s208
      %p222 = scmp.eq.s32.totalorder %s37, 1
      %p223 = por %p221, %p222
      %p225 = scmp.ne.s32.totalorder %s208, %s224
      %p226 = scmp.eq.s32.totalorder %s37, 0
      %p227 = por %p225, %p226
      %s228 = ssub.s32 %s39, %s46
      %p229 = scmp.eq.s32.totalorder %s228, 0
      %s231 = sadd.s32 %s230, 1
      %s232 = scalar_select %p229, %s230, %s231
      %p235 = pneg %p229
      %p236 = scmp.eq.s32.totalorder %s31, 1
      %p237 = por %p235, %p236
      %p238 = scmp.ne.s32.totalorder %s230, %s233
      %p239 = scmp.eq.s32.totalorder %s31, 0
      %p240 = por %p238, %p239
      %p241 = scmp.ne.s32.totalorder %s230, %s233
      %p242 = scmp.eq.s32.totalorder %s36, 1
      %p243 = por %p241, %p242
      %p244 = scmp.ne.s32.totalorder %s233, %s234
      %p245 = scmp.eq.s32.totalorder %s36, 0
      %p246 = por %p244, %p245
      %p247 = scmp.ne.s32.totalorder %s233, %s234
      %p248 = scmp.eq.s32.totalorder %s37, 1
      %p249 = por %p247, %p248
      %p251 = scmp.ne.s32.totalorder %s234, %s250
      %p252 = scmp.eq.s32.totalorder %s37, 0
      %p253 = por %p251, %p252
      %s254 = ssub.s32 %s39, %s46
      %p255 = scmp.eq.s32.totalorder %s254, 0
      %s257 = sadd.s32 %s256, 1
      %s258 = scalar_select %p255, %s256, %s257
      %p261 = pneg %p255
      %p262 = scmp.eq.s32.totalorder %s31, 1
      %p263 = por %p261, %p262
      %p264 = scmp.ne.s32.totalorder %s256, %s259
      %p265 = scmp.eq.s32.totalorder %s31, 0
      %p266 = por %p264, %p265
      %p267 = scmp.ne.s32.totalorder %s256, %s259
      %p268 = scmp.eq.s32.totalorder %s36, 1
      %p269 = por %p267, %p268
      %p270 = scmp.ne.s32.totalorder %s259, %s260
      %p271 = scmp.eq.s32.totalorder %s36, 0
      %p272 = por %p270, %p271
      %p273 = scmp.ne.s32.totalorder %s259, %s260
      %p274 = scmp.eq.s32.totalorder %s37, 1
      %p275 = por %p273, %p274
      %p277 = scmp.ne.s32.totalorder %s260, %s276
      %p278 = scmp.eq.s32.totalorder %s37, 0
      %p279 = por %p277, %p278
      %s280 = ssub.s32 %s39, %s46
      %p281 = scmp.eq.s32.totalorder %s280, 0
      %s283 = sadd.s32 %s282, 1
      %s284 = scalar_select %p281, %s282, %s283
      %p287 = pneg %p281
      %p288 = scmp.eq.s32.totalorder %s31, 1
      %p289 = por %p287, %p288
      %p290 = scmp.ne.s32.totalorder %s282, %s285
      %p291 = scmp.eq.s32.totalorder %s31, 0
      %p292 = por %p290, %p291
      %p293 = scmp.ne.s32.totalorder %s282, %s285
      %p294 = scmp.eq.s32.totalorder %s36, 1
      %p295 = por %p293, %p294
      %p296 = scmp.ne.s32.totalorder %s285, %s286
      %p297 = scmp.eq.s32.totalorder %s36, 0
      %p298 = por %p296, %p297
      %p299 = scmp.ne.s32.totalorder %s285, %s286
      %p300 = scmp.eq.s32.totalorder %s37, 1
      %p301 = por %p299, %p300
      %p303 = scmp.ne.s32.totalorder %s286, %s302
      %p304 = scmp.eq.s32.totalorder %s37, 0
      %p305 = por %p303, %p304
      %s306 = ssub.s32 %s39, %s46
      %p307 = scmp.eq.s32.totalorder %s306, 0
      %s309 = sadd.s32 %s308, 1
      %s310 = scalar_select %p307, %s308, %s309
      %p313 = pneg %p307
      %p314 = scmp.eq.s32.totalorder %s31, 1
      %p315 = por %p313, %p314
      %p316 = scmp.ne.s32.totalorder %s308, %s311
      %p317 = scmp.eq.s32.totalorder %s31, 0
      %p318 = por %p316, %p317
      %p319 = scmp.ne.s32.totalorder %s308, %s311
      %p320 = scmp.eq.s32.totalorder %s36, 1
      %p321 = por %p319, %p320
      %p322 = scmp.ne.s32.totalorder %s311, %s312
      %p323 = scmp.eq.s32.totalorder %s36, 0
      %p324 = por %p322, %p323
      %p325 = scmp.ne.s32.totalorder %s311, %s312
      %p326 = scmp.eq.s32.totalorder %s37, 1
      %p327 = por %p325, %p326
      %p329 = scmp.ne.s32.totalorder %s312, %s328
      %p330 = scmp.eq.s32.totalorder %s37, 0
      %p331 = por %p329, %p330
      %s332 = ssub.s32 %s39, %s46
      %p333 = scmp.eq.s32.totalorder %s332, 0
      %s335 = sadd.s32 %s334, 1
      %s336 = scalar_select %p333, %s334, %s335
      %p339 = pneg %p333
      %p340 = scmp.eq.s32.totalorder %s31, 1
      %p341 = por %p339, %p340
      %p342 = scmp.ne.s32.totalorder %s334, %s337
      %p343 = scmp.eq.s32.totalorder %s31, 0
      %p344 = por %p342, %p343
      %p345 = scmp.ne.s32.totalorder %s334, %s337
      %p346 = scmp.eq.s32.totalorder %s36, 1
      %p347 = por %p345, %p346
      %p348 = scmp.ne.s32.totalorder %s337, %s338
      %p349 = scmp.eq.s32.totalorder %s36, 0
      %p350 = por %p348, %p349
      %p351 = scmp.ne.s32.totalorder %s337, %s338
      %p352 = scmp.eq.s32.totalorder %s37, 1
      %p353 = por %p351, %p352
      %p355 = scmp.ne.s32.totalorder %s338, %s354
      %p356 = scmp.eq.s32.totalorder %s37, 0
      %p357 = por %p355, %p356
      %s358 = ssub.s32 %s39, %s46
      %p359 = scmp.eq.s32.totalorder %s358, 0
      %s361 = sadd.s32 %s360, 1
      %s362 = scalar_select %p359, %s360, %s361
      %p365 = pneg %p359
      %p366 = scmp.eq.s32.totalorder %s31, 1
      %p367 = por %p365, %p366
      %p368 = scmp.ne.s32.totalorder %s360, %s363
      %p369 = scmp.eq.s32.totalorder %s31, 0
      %p370 = por %p368, %p369
      %p371 = scmp.ne.s32.totalorder %s360, %s363
      %p372 = scmp.eq.s32.totalorder %s36, 1
      %p373 = por %p371, %p372
      %p374 = scmp.ne.s32.totalorder %s363, %s364
      %p375 = scmp.eq.s32.totalorder %s36, 0
      %p376 = por %p374, %p375
      %p377 = scmp.ne.s32.totalorder %s363, %s364
      %p378 = scmp.eq.s32.totalorder %s37, 1
      %p379 = por %p377, %p378
      %p381 = scmp.ne.s32.totalorder %s364, %s380
      %p382 = scmp.eq.s32.totalorder %s37, 0
      %p383 = por %p381, %p382
      %s384 = ssub.s32 %s39, %s46
      %p385 = scmp.eq.s32.totalorder %s384, 0
      %s387 = sadd.s32 %s386, 1
      %s388 = scalar_select %p385, %s386, %s387
      %p391 = pneg %p385
      %p392 = scmp.eq.s32.totalorder %s31, 1
      %p393 = por %p391, %p392
      %p394 = scmp.ne.s32.totalorder %s386, %s389
      %p395 = scmp.eq.s32.totalorder %s31, 0
      %p396 = por %p394, %p395
      %p397 = scmp.ne.s32.totalorder %s386, %s389
      %p398 = scmp.eq.s32.totalorder %s36, 1
      %p399 = por %p397, %p398
      %p400 = scmp.ne.s32.totalorder %s389, %s390
      %p401 = scmp.eq.s32.totalorder %s36, 0
      %p402 = por %p400, %p401
      %p403 = scmp.ne.s32.totalorder %s389, %s390
      %p404 = scmp.eq.s32.totalorder %s37, 1
      %p405 = por %p403, %p404
      %p407 = scmp.ne.s32.totalorder %s390, %s406
      %p408 = scmp.eq.s32.totalorder %s37, 0
      %p409 = por %p407, %p408
      %s411 = sadd.s32 %s410, 1
      %p414 = scmp.eq.s32.totalorder %s31, 1
      %p415 = scmp.ne.s32.totalorder %s410, %s412
      %p416 = scmp.eq.s32.totalorder %s31, 0
      %p417 = por %p415, %p416
      %p418 = scmp.ne.s32.totalorder %s410, %s412
      %p419 = scmp.eq.s32.totalorder %s36, 1
      %p420 = por %p418, %p419
      %p421 = scmp.ne.s32.totalorder %s412, %s413
      %p422 = scmp.eq.s32.totalorder %s36, 0
      %p423 = por %p421, %p422
      %p424 = scmp.ne.s32.totalorder %s412, %s413
      %p425 = scmp.eq.s32.totalorder %s37, 1
      %p426 = por %p424, %p425
      %p428 = scmp.ne.s32.totalorder %s413, %s427
      %p429 = scmp.eq.s32.totalorder %s37, 0
      %p430 = por %p428, %p429
      %s432 = sadd.s32 %s431, 1
      %p435 = scmp.eq.s32.totalorder %s31, 1
      %p436 = scmp.ne.s32.totalorder %s431, %s433
      %p437 = scmp.eq.s32.totalorder %s31, 0
      %p438 = por %p436, %p437
      %p439 = scmp.ne.s32.totalorder %s431, %s433
      %p440 = scmp.eq.s32.totalorder %s36, 1
      %p441 = por %p439, %p440
      %p442 = scmp.ne.s32.totalorder %s433, %s434
      %p443 = scmp.eq.s32.totalorder %s36, 0
      %p444 = por %p442, %p443
      %p445 = scmp.ne.s32.totalorder %s433, %s434
      %p446 = scmp.eq.s32.totalorder %s37, 1
      %p447 = por %p445, %p446
      %p449 = scmp.ne.s32.totalorder %s434, %s448
      %p450 = scmp.eq.s32.totalorder %s37, 0
      %p451 = por %p449, %p450
      %s453 = sadd.s32 %s452, 1
      %p456 = scmp.eq.s32.totalorder %s31, 1
      %p457 = scmp.ne.s32.totalorder %s452, %s454
      %p458 = scmp.eq.s32.totalorder %s31, 0
      %p459 = por %p457, %p458
      %p460 = scmp.ne.s32.totalorder %s452, %s454
      %p461 = scmp.eq.s32.totalorder %s36, 1
      %p462 = por %p460, %p461
      %p463 = scmp.ne.s32.totalorder %s454, %s455
      %p464 = scmp.eq.s32.totalorder %s36, 0
      %p465 = por %p463, %p464
      %p466 = scmp.ne.s32.totalorder %s454, %s455
      %p467 = scmp.eq.s32.totalorder %s37, 1
      %p468 = por %p466, %p467
      %p470 = scmp.ne.s32.totalorder %s455, %s469
      %p471 = scmp.eq.s32.totalorder %s37, 0
      %p472 = por %p470, %p471
      %s473 = ssub.s32 %s38, %s50
      %p474 = scmp.eq.s32.totalorder %s473, 0
      %s476 = sadd.s32 %s475, 1
      %s477 = scalar_select %p474, %s475, %s476
      %p480 = pneg %p474
      %p481 = scmp.eq.s32.totalorder %s31, 1
      %p482 = por %p480, %p481
      %p483 = scmp.ne.s32.totalorder %s475, %s478
      %p484 = scmp.eq.s32.totalorder %s31, 0
      %p485 = por %p483, %p484
      %p486 = scmp.ne.s32.totalorder %s475, %s478
      %p487 = scmp.eq.s32.totalorder %s36, 1
      %p488 = por %p486, %p487
      %p489 = scmp.ne.s32.totalorder %s478, %s479
      %p490 = scmp.eq.s32.totalorder %s36, 0
      %p491 = por %p489, %p490
      %p492 = scmp.ne.s32.totalorder %s478, %s479
      %p493 = scmp.eq.s32.totalorder %s37, 1
      %p494 = por %p492, %p493
      %p496 = scmp.ne.s32.totalorder %s479, %s495
      %p497 = scmp.eq.s32.totalorder %s37, 0
      %p498 = por %p496, %p497
      %p499 = scmp.le.s32.totalorder 1, %s31
      %p500 = scmp.lt.s32.totalorder %s31, 3
      %p501 = pnand %p499, %p500
      %p502 = pneg %p501
      // Predicated region
      $region9: #{tpu_custom_call.1} parent=5 // pred_check
        _
      $region10: #{tpu_custom_call.1} parent=5 // pred_check_branch
        %504 = sbr.rel (%p501) target = $region12
      $region11: #{tpu_custom_call.1} parent=5 // pred_region
        %s505 = ssub.s32 %s31, 1
        // Predicated region
        $region13: #{tpu_custom_call.1} parent=11 // pred_check
          %p506 = pneg %p69
        $region14: #{tpu_custom_call.1} parent=11 // pred_check_branch
          %508 = sbr.rel (%p506) target = $region16
        $region15: #{tpu_custom_call.1} parent=11 // pred_region
          %s509 = smul.u32 2, %s40
          %p510 = scmp.lt.s32.totalorder %s509, 1
          %s511 = scalar_select %p510, %s509, 1
          %s512 = smul.addr %s511, 8
          %s513 = scalar_lea.vmem %s1, %s512
          %s514 = smul.u32 2, %s40
        $region16: #{tpu_custom_call.1} parent=11 // pred_fallthru
          _
        // Predicated region
        $region17: #{tpu_custom_call.1} parent=11 // pred_check
          %p515 = pneg %p90
        $region18: #{tpu_custom_call.1} parent=11 // pred_check_branch
          %517 = sbr.rel (%p515) target = $region20
        $region19: #{tpu_custom_call.1} parent=11 // pred_region
          _
        $region20: #{tpu_custom_call.1} parent=11 // pred_fallthru
          _
        // Predicated region
        $region21: #{tpu_custom_call.1} parent=11 // pred_check
          %p518 = pneg %p423
        $region22: #{tpu_custom_call.1} parent=11 // pred_check_branch
          %520 = sbr.rel (%p518) target = $region24
        $region23: #{tpu_custom_call.1} parent=11 // pred_region
          _
        $region24: #{tpu_custom_call.1} parent=11 // pred_fallthru
          _
        // Predicated region
        $region25: #{tpu_custom_call.1} parent=11 // pred_check
          %p521 = pneg %p444
        $region26: #{tpu_custom_call.1} parent=11 // pred_check_branch
          %523 = sbr.rel (%p521) target = $region28
        $region27: #{tpu_custom_call.1} parent=11 // pred_region
          _
        $region28: #{tpu_custom_call.1} parent=11 // pred_fallthru
          _
        // Predicated region
        $region29: #{tpu_custom_call.1} parent=11 // pred_check
          %p524 = pneg %p465
        $region30: #{tpu_custom_call.1} parent=11 // pred_check_branch
          %526 = sbr.rel (%p524) target = $region32
        $region31: #{tpu_custom_call.1} parent=11 // pred_region
          _
        $region32: #{tpu_custom_call.1} parent=11 // pred_fallthru
          _
      $region12: #{tpu_custom_call.1} parent=5 // pred_fallthru
        _
      %p527 = scmp.lt.s32.totalorder %s31, 2
      // Predicated region
      $region33: #{tpu_custom_call.1} parent=5 // pred_check
        %p528 = pneg %p527
      $region34: #{tpu_custom_call.1} parent=5 // pred_check_branch
        %530 = sbr.rel (%p528) target = $region36
      $region35: #{tpu_custom_call.1} parent=5 // pred_region
        // Predicated region
        $region37: #{tpu_custom_call.1} parent=35 // pred_check
          %p531 = pneg %p110
        $region38: #{tpu_custom_call.1} parent=35 // pred_check_branch
          %533 = sbr.rel (%p531) target = $region40
        $region39: #{tpu_custom_call.1} parent=35 // pred_region
          %p534 = scmp.lt.s32.totalorder %s39, 1
          %s535 = scalar_select %p534, %s39, 1
          %s536 = scalar_lea.vmem %s3, %s535
        $region40: #{tpu_custom_call.1} parent=35 // pred_fallthru
          _
        // Predicated region
        $region41: #{tpu_custom_call.1} parent=35 // pred_check
          %p537 = pneg %p136
        $region42: #{tpu_custom_call.1} parent=35 // pred_check_branch
          %539 = sbr.rel (%p537) target = $region44
        $region43: #{tpu_custom_call.1} parent=35 // pred_region
          %p540 = scmp.lt.s32.totalorder %s39, 1
          %s541 = scalar_select %p540, %s39, 1
          %s542 = scalar_lea.vmem %s4, %s541
        $region44: #{tpu_custom_call.1} parent=35 // pred_fallthru
          _
        // Predicated region
        $region45: #{tpu_custom_call.1} parent=35 // pred_check
          %p543 = pneg %p162
        $region46: #{tpu_custom_call.1} parent=35 // pred_check_branch
          %545 = sbr.rel (%p543) target = $region48
        $region47: #{tpu_custom_call.1} parent=35 // pred_region
          %p546 = scmp.lt.s32.totalorder %s39, 1
          %s547 = scalar_select %p546, %s39, 1
          %s548 = smul.addr %s547, 4
          %s549 = smul.addr %s548, 4
          %s550 = scalar_lea.vmem %s5, %s549
        $region48: #{tpu_custom_call.1} parent=35 // pred_fallthru
          _
        // Predicated region
        $region49: #{tpu_custom_call.1} parent=35 // pred_check
          %p551 = pneg %p188
        $region50: #{tpu_custom_call.1} parent=35 // pred_check_branch
          %553 = sbr.rel (%p551) target = $region52
        $region51: #{tpu_custom_call.1} parent=35 // pred_region
          %p554 = scmp.lt.s32.totalorder %s39, 1
          %s555 = scalar_select %p554, %s39, 1
          %s556 = scalar_lea.vmem %s6, %s555
        $region52: #{tpu_custom_call.1} parent=35 // pred_fallthru
          _
        // Predicated region
        $region53: #{tpu_custom_call.1} parent=35 // pred_check
          %p557 = pneg %p214
        $region54: #{tpu_custom_call.1} parent=35 // pred_check_branch
          %559 = sbr.rel (%p557) target = $region56
        $region55: #{tpu_custom_call.1} parent=35 // pred_region
          %p560 = scmp.lt.s32.totalorder %s39, 1
          %s561 = scalar_select %p560, %s39, 1
          %s562 = smul.addr %s561, 4
          %s563 = smul.addr %s562, 4
          %s564 = scalar_lea.vmem %s7, %s563
        $region56: #{tpu_custom_call.1} parent=35 // pred_fallthru
          _
        // Predicated region
        $region57: #{tpu_custom_call.1} parent=35 // pred_check
          %p565 = pneg %p240
        $region58: #{tpu_custom_call.1} parent=35 // pred_check_branch
          %567 = sbr.rel (%p565) target = $region60
        $region59: #{tpu_custom_call.1} parent=35 // pred_region
          %p568 = scmp.lt.s32.totalorder %s39, 1
          %s569 = scalar_select %p568, %s39, 1
          %s570 = scalar_lea.vmem %s8, %s569
        $region60: #{tpu_custom_call.1} parent=35 // pred_fallthru
          _
        // Predicated region
        $region61: #{tpu_custom_call.1} parent=35 // pred_check
          %p571 = pneg %p266
        $region62: #{tpu_custom_call.1} parent=35 // pred_check_branch
          %573 = sbr.rel (%p571) target = $region64
        $region63: #{tpu_custom_call.1} parent=35 // pred_region
          %p574 = scmp.lt.s32.totalorder %s39, 1
          %s575 = scalar_select %p574, %s39, 1
          %s576 = scalar_lea.vmem %s9, %s575
        $region64: #{tpu_custom_call.1} parent=35 // pred_fallthru
          _
        // Predicated region
        $region65: #{tpu_custom_call.1} parent=35 // pred_check
          %p577 = pneg %p292
        $region66: #{tpu_custom_call.1} parent=35 // pred_check_branch
          %579 = sbr.rel (%p577) target = $region68
        $region67: #{tpu_custom_call.1} parent=35 // pred_region
          %p580 = scmp.lt.s32.totalorder %s39, 1
          %s581 = scalar_select %p580, %s39, 1
          %s582 = scalar_lea.vmem %s10, %s581
        $region68: #{tpu_custom_call.1} parent=35 // pred_fallthru
          _
        // Predicated region
        $region69: #{tpu_custom_call.1} parent=35 // pred_check
          %p583 = pneg %p318
        $region70: #{tpu_custom_call.1} parent=35 // pred_check_branch
          %585 = sbr.rel (%p583) target = $region72
        $region71: #{tpu_custom_call.1} parent=35 // pred_region
          %p586 = scmp.lt.s32.totalorder %s39, 1
          %s587 = scalar_select %p586, %s39, 1
          %s588 = smul.addr %s587, 4
          %s589 = smul.addr %s588, 4
          %s590 = scalar_lea.vmem %s11, %s589
        $region72: #{tpu_custom_call.1} parent=35 // pred_fallthru
          _
        // Predicated region
        $region73: #{tpu_custom_call.1} parent=35 // pred_check
          %p591 = pneg %p344
        $region74: #{tpu_custom_call.1} parent=35 // pred_check_branch
          %593 = sbr.rel (%p591) target = $region76
        $region75: #{tpu_custom_call.1} parent=35 // pred_region
          %p594 = scmp.lt.s32.totalorder %s39, 1
          %s595 = scalar_select %p594, %s39, 1
          %s596 = scalar_lea.vmem %s12, %s595
        $region76: #{tpu_custom_call.1} parent=35 // pred_fallthru
          _
        // Predicated region
        $region77: #{tpu_custom_call.1} parent=35 // pred_check
          %p597 = pneg %p370
        $region78: #{tpu_custom_call.1} parent=35 // pred_check_branch
          %599 = sbr.rel (%p597) target = $region80
        $region79: #{tpu_custom_call.1} parent=35 // pred_region
          %p600 = scmp.lt.s32.totalorder %s39, 1
          %s601 = scalar_select %p600, %s39, 1
          %s602 = smul.addr %s601, 16
          %s603 = smul.addr %s602, 4
          %s604 = scalar_lea.vmem %s13, %s603
        $region80: #{tpu_custom_call.1} parent=35 // pred_fallthru
          _
        // Predicated region
        $region81: #{tpu_custom_call.1} parent=35 // pred_check
          %p605 = pneg %p396
        $region82: #{tpu_custom_call.1} parent=35 // pred_check_branch
          %607 = sbr.rel (%p605) target = $region84
        $region83: #{tpu_custom_call.1} parent=35 // pred_region
          %p608 = scmp.lt.s32.totalorder %s39, 1
          %s609 = scalar_select %p608, %s39, 1
          %s610 = scalar_lea.vmem %s14, %s609
        $region84: #{tpu_custom_call.1} parent=35 // pred_fallthru
          _
      $region36: #{tpu_custom_call.1} parent=5 // pred_fallthru
        _
      %p611 = scmp.le.s32.totalorder 1, %s31
      %p612 = scmp.lt.s32.totalorder %s31, 3
      %p613 = pnand %p611, %p612
      %p614 = pneg %p613
      // Predicated region
      $region85: #{tpu_custom_call.1} parent=5 // pred_check
        _
      $region86: #{tpu_custom_call.1} parent=5 // pred_check_branch
        %616 = sbr.rel (%p613) target = $region88
      $region87: #{tpu_custom_call.1} parent=5 // pred_region
        %s617 = ssub.s32 %s31, 1
        %s618 = smul.u32 2, %s40
        %p619 = scmp.lt.s32.totalorder %s618, 1
        %s620 = scalar_select %p619, %s618, 1
        %s621 = smul.addr %s620, 8
        %s622 = scalar_lea.vmem %s1, %s621
        %p623 = pneg %p69
        %p624 = pneg %p66
        %p625 = pneg %p90
        %p626 = pneg %p87
        %p627 = scmp.lt.s32.totalorder %s41, 1
        %s628 = scalar_select %p627, %s41, 1
        %s629 = scalar_lea.vmem %s3, %s628
        %p630 = pneg %p116
        %p631 = pneg %p113
        %p632 = scmp.lt.s32.totalorder %s41, 1
        %s633 = scalar_select %p632, %s41, 1
        %s634 = scalar_lea.vmem %s4, %s633
        %p635 = pneg %p142
        %p636 = pneg %p139
        %p637 = scmp.lt.s32.totalorder %s41, 1
        %s638 = scalar_select %p637, %s41, 1
        %s639 = smul.addr %s638, 4
        %s640 = smul.addr %s639, 4
        %s641 = scalar_lea.vmem %s5, %s640
        %p642 = pneg %p168
        %p643 = pneg %p165
        %p644 = scmp.lt.s32.totalorder %s41, 1
        %s645 = scalar_select %p644, %s41, 1
        %s646 = scalar_lea.vmem %s6, %s645
        %p647 = pneg %p194
        %p648 = pneg %p191
        %p649 = scmp.lt.s32.totalorder %s41, 1
        %s650 = scalar_select %p649, %s41, 1
        %s651 = smul.addr %s650, 4
        %s652 = smul.addr %s651, 4
        %s653 = scalar_lea.vmem %s7, %s652
        %p654 = pneg %p220
        %p655 = pneg %p217
        %p656 = scmp.lt.s32.totalorder %s41, 1
        %s657 = scalar_select %p656, %s41, 1
        %s658 = scalar_lea.vmem %s8, %s657
        %p659 = pneg %p246
        %p660 = pneg %p243
        %p661 = scmp.lt.s32.totalorder %s41, 1
        %s662 = scalar_select %p661, %s41, 1
        %s663 = scalar_lea.vmem %s9, %s662
        %p664 = pneg %p272
        %p665 = pneg %p269
        %p666 = scmp.lt.s32.totalorder %s41, 1
        %s667 = scalar_select %p666, %s41, 1
        %s668 = scalar_lea.vmem %s10, %s667
        %p669 = pneg %p298
        %p670 = pneg %p295
        %p671 = scmp.lt.s32.totalorder %s41, 1
        %s672 = scalar_select %p671, %s41, 1
        %s673 = smul.addr %s672, 4
        %s674 = smul.addr %s673, 4
        %s675 = scalar_lea.vmem %s11, %s674
        %p676 = pneg %p324
        %p677 = pneg %p321
        %p678 = scmp.lt.s32.totalorder %s41, 1
        %s679 = scalar_select %p678, %s41, 1
        %s680 = scalar_lea.vmem %s12, %s679
        %p681 = pneg %p350
        %p682 = pneg %p347
        %p683 = scmp.lt.s32.totalorder %s41, 1
        %s684 = scalar_select %p683, %s41, 1
        %s685 = smul.addr %s684, 16
        %s686 = smul.addr %s685, 4
        %s687 = scalar_lea.vmem %s13, %s686
        %p688 = pneg %p376
        %p689 = pneg %p373
        %p690 = scmp.lt.s32.totalorder %s41, 1
        %s691 = scalar_select %p690, %s41, 1
        %s692 = scalar_lea.vmem %s14, %s691
        %p693 = pneg %p402
        %p694 = pneg %p399
        %p695 = pneg %p423
        %p696 = pneg %p420
        %p697 = pneg %p444
        %p698 = pneg %p441
        %p699 = pneg %p465
        %p700 = pneg %p462
        %p701 = pneg %p491
        %p702 = pneg %p488
        %s703 = smul.u32 2, %s40
        %p704 = scmp.lt.s32.totalorder %s703, 1
        %s705 = scalar_select %p704, %s703, 1
        %s706 = smul.addr %s705, 8
        %s707 = scalar_lea.vmem %s1, %s706
        %s708 = smul.u32 2, %s40
        %p709 = scmp.lt.s32.totalorder %s41, 1
        %s710 = scalar_select %p709, %s41, 1
        %s711 = scalar_lea.vmem %s3, %s710
        %p712 = scmp.lt.s32.totalorder %s41, 1
        %s713 = scalar_select %p712, %s41, 1
        %s714 = scalar_lea.vmem %s4, %s713
        %p715 = scmp.lt.s32.totalorder %s41, 1
        %s716 = scalar_select %p715, %s41, 1
        %s717 = smul.addr %s716, 4
        %s718 = smul.addr %s717, 4
        %s719 = scalar_lea.vmem %s5, %s718
        %p720 = scmp.lt.s32.totalorder %s41, 1
        %s721 = scalar_select %p720, %s41, 1
        %s722 = scalar_lea.vmem %s6, %s721
        %p723 = scmp.lt.s32.totalorder %s41, 1
        %s724 = scalar_select %p723, %s41, 1
        %s725 = smul.addr %s724, 4
        %s726 = smul.addr %s725, 4
        %s727 = scalar_lea.vmem %s7, %s726
        %p728 = scmp.lt.s32.totalorder %s41, 1
        %s729 = scalar_select %p728, %s41, 1
        %s730 = scalar_lea.vmem %s8, %s729
        %p731 = scmp.lt.s32.totalorder %s41, 1
        %s732 = scalar_select %p731, %s41, 1
        %s733 = scalar_lea.vmem %s9, %s732
        %p734 = scmp.lt.s32.totalorder %s41, 1
        %s735 = scalar_select %p734, %s41, 1
        %s736 = scalar_lea.vmem %s10, %s735
        %p737 = scmp.lt.s32.totalorder %s41, 1
        %s738 = scalar_select %p737, %s41, 1
        %s739 = smul.addr %s738, 4
        %s740 = smul.addr %s739, 4
        %s741 = scalar_lea.vmem %s11, %s740
        %p742 = scmp.lt.s32.totalorder %s41, 1
        %s743 = scalar_select %p742, %s41, 1
        %s744 = scalar_lea.vmem %s12, %s743
        %p745 = scmp.lt.s32.totalorder %s41, 1
        %s746 = scalar_select %p745, %s41, 1
        %s747 = smul.addr %s746, 16
        %s748 = smul.addr %s747, 4
        %s749 = scalar_lea.vmem %s13, %s748
        %p750 = scmp.lt.s32.totalorder %s41, 1
        %s751 = scalar_select %p750, %s41, 1
        %s752 = scalar_lea.vmem %s14, %s751
        %p754 = scmp.eq.s32.totalorder %s41, 0
        // Predicated region
        $region89: #{tpu_custom_call.1} parent=87 // pred_check
          %p755 = pneg %p754
        $region90: #{tpu_custom_call.1} parent=87 // pred_check_branch
          %757 = sbr.rel (%p755) target = $region92
        $region91: #{tpu_custom_call.1} parent=87 // pred_region
          %v758 = vld [vmem:[%s707] sm:$0xff]
          %v759 = vld [vmem:[%s707 + $0x8] sm:$0xff]
          %v760 = vld [vmem:[%s2] sm:$0xff]
          %v761 = vadd.f32 %v758, %v760
          %v762 = vadd.f32 %v759, %v760
          %vm763 = vcmask 261120
          %764 = vst.msk [vmem:[#allocation2] sm:$0xff] %vm763, %v761
          %765 = vst.msk [vmem:[#allocation2 + $0x8] sm:$0xff] %vm763, %v762
        $region92: #{tpu_custom_call.1} parent=87 // pred_fallthru
          _
        %v766 = vlaneseq
        %v767 = vshrl.u32 %v766, 7
        %v768 = vlaneseq
        %v769 = vand.u32 %v768, 127
        %vm770 = vcmp.le.s32.totalorder %v769, %v767
        %v771 = vld [vmem:[#allocation2] sm:$0xff]
        %v772 = vld [vmem:[#allocation2 + $0x8] sm:$0xff]
        %v773 = vld [vmem:[%s711] sm:$0x1]
        %v774 = vld [vmem:[%s714] sm:$0x1]
        %vm775 = vcmask 261120
        %v776 = vsel %vm775, %v771, 0.0
        %777 = vadd.xlane.f32.xlu0 %v776
        %v778 = vpop.xlane.xlu0 %777
        %v779 = vsel %vm775, %v772, 0.0
        %780 = vadd.xlane.f32.xlu0 %v779
        %v781 = vpop.xlane.xlu0 %780
        %v782 = vrcp.pop 32.0
        %v783 = vmul.f32 %v778, %v782
        %v784 = vmul.f32 %v781, %v782
        %v785 = vsub.f32 %v771, %v783
        %v786 = vsub.f32 %v772, %v784
        %v787 = vmul.f32 %v785, %v785
        %v788 = vmul.f32 %v786, %v786
        %v789 = vsel %vm775, %v787, 0.0
        %790 = vadd.xlane.f32.xlu0 %v789
        %v791 = vpop.xlane.xlu0 %790
        %v792 = vsel %vm775, %v788, 0.0
        %793 = vadd.xlane.f32.xlu0 %v792
        %v794 = vpop.xlane.xlu0 %793
        %v795 = vmul.f32 %v791, %v782
        %v796 = vmul.f32 %v794, %v782
        %v797 = vadd.f32 %v795, 1e-05
        %v798 = vadd.f32 %v796, 1e-05
        %v799 = vrsqrt.pop %v797
        %v800 = vrsqrt.pop %v798
        %v801 = vmul.f32 %v785, %v799
        %v802 = vmul.f32 %v786, %v800
        %v804 = vlaneseq
        %v805 = vshrl.u32 %v804, 7
        %v806 = vsub.s32 0, %v805
        %v807 = vrot.slane %v773, %v806
        %v809 = vmul.f32 %v801, %v807
        %v810 = vmul.f32 %v802, %v807
        %v812 = vlaneseq
        %v813 = vshrl.u32 %v812, 7
        %v814 = vsub.s32 0, %v813
        %v815 = vrot.slane %v774, %v814
        %v817 = vadd.f32 %v809, %v815
        %v818 = vadd.f32 %v810, %v815
        %v819 = vpack.c.bf16 %v818, %v817
        %v820 = vld [vmem:[%s719] sm:$0xf]
        %v821 = vld [vmem:[%s719 + $0x4] sm:$0xf]
        %v822 = vld [vmem:[%s719 + $0x8] sm:$0xf]
        %v823 = vld [vmem:[%s719 + $0xc] sm:$0xf]
        %v824 = vld [vmem:[%s722] sm:$0x1]
        %v826 = vlaneseq
        %v827 = vshrl.u32 %v826, 7
        %v828 = vsub.s32 0, %v827
        %v829 = vrot.slane %v824, %v828
        %v835 = vunpack.c.l.b16 %v820
        %v836 = vunpack.c.l.b16 %v821
        %v837 = vunpack.c.l.b16 %v822
        %v838 = vunpack.c.l.b16 %v823
        %v839 = vpack.c.b16 %v836, %v835
        %v840 = vpack.c.b16 %v838, %v837
        %v844 = vsel %vm775, %v819, 0
        %846 = vmatprep.subr.bf16.mxu0 0
        %847 = vmatpush1.bf16.msra.mxu0 %v839
        %848 = vmatprep.subr.bf16.mxu0 0
        %849 = vmatpush1.bf16.msra.mxu0 %v840
        %850 = vmatprep.subr.bf16.mxu0 0
        %851 = vmatpush1.bf16.msra.mxu0 0
        %852 = vmatprep.subr.bf16.mxu0 0
        %853 = vmatpush1.bf16.msra.mxu0 0
        %854 = vmatprep.subr.bf16.mxu0 0
        %855 = vmatpush1.bf16.msra.mxu0 0
        %856 = vmatprep.subr.bf16.mxu0 0
        %857 = vmatpush1.bf16.msra.mxu0 0
        %858 = vmatprep.subr.bf16.mxu0 0
        %859 = vmatpush1.bf16.msra.mxu0 0
        %860 = vmatprep.subr.bf16.mxu0 0
        %861 = vmatpush1.bf16.msra.mxu0 0
        %862 = vmatprep.subr.bf16.mxu0 0
        %863 = vmatpush1.bf16.msra.mxu0 0
        %864 = vmatprep.subr.bf16.mxu0 0
        %865 = vmatpush1.bf16.msra.mxu0 0
        %866 = vmatprep.subr.bf16.mxu0 0
        %867 = vmatpush1.bf16.msra.mxu0 0
        %868 = vmatprep.subr.bf16.mxu0 0
        %869 = vmatpush1.bf16.msra.mxu0 0
        %870 = vmatprep.subr.bf16.mxu0 0
        %871 = vmatpush1.bf16.msra.mxu0 0
        %872 = vmatprep.subr.bf16.mxu0 0
        %873 = vmatpush1.bf16.msra.mxu0 0
        %874 = vmatprep.subr.bf16.mxu0 0
        %875 = vmatpush1.bf16.msra.mxu0 0
        %876 = vmatprep.subr.bf16.mxu0 0
        %877 = vmatpush1.bf16.msra.mxu0 0
        %878 = vmatprep.mubr.bf16.mxu0 0
        %879 = vmatmul.mubr.bf16.gmra.mrb[0].mxu0 %v844
        %v880 = vpop.f32.mrb[0].mxu0
        %v881 = vadd.f32 %v829, %v880
        %v882 = vpop.f32.mrb[0].mxu0
        %v883 = vpop.f32.mrb[0].mxu0
        %v884 = vadd.f32 %v829, %v883
        %v885 = vpop.f32.mrb[0].mxu0
        %886 = vdwg.mxu0
        %v887 = vmul.f32 %v881, 0.35355338
        %v888 = vmul.f32 %v884, 0.35355338
        %891 = vrot.lane.b32.xlu0 %v887, 120
        %v892 = vpop.permute.xlu0 %891
        %893 = vrot.lane.b32.xlu0 %v888, 120
        %v894 = vpop.permute.xlu0 %893
        %897 = vrot.lane.b32.xlu0 %v887, 112
        %v898 = vpop.permute.xlu0 %897
        %899 = vrot.lane.b32.xlu0 %v888, 112
        %v900 = vpop.permute.xlu0 %899
        %903 = vrot.lane.b32.xlu0 %v887, 104
        %v904 = vpop.permute.xlu0 %903
        %905 = vrot.lane.b32.xlu0 %v888, 104
        %v906 = vpop.permute.xlu0 %905
        %v909 = vpack.c.bf16 %v887, %v887
        %v910 = vpack.c.bf16 %v888, %v888
        %v911 = vpack.c.bf16 %v892, %v892
        %v912 = vpack.c.bf16 %v894, %v894
        %v913 = vpack.c.bf16 %v898, %v898
        %v914 = vpack.c.bf16 %v900, %v900
        %v915 = vpack.c.bf16 %v904, %v904
        %v916 = vpack.c.bf16 %v906, %v906
        %919 = vrot.lane.b32.xlu0 %v881, 120
        %v920 = vpop.permute.xlu0 %919
        %921 = vrot.lane.b32.xlu0 %v884, 120
        %v922 = vpop.permute.xlu0 %921
        %925 = vrot.lane.b32.xlu0 %v881, 112
        %v926 = vpop.permute.xlu0 %925
        %927 = vrot.lane.b32.xlu0 %v884, 112
        %v928 = vpop.permute.xlu0 %927
        %931 = vrot.lane.b32.xlu0 %v881, 104
        %v932 = vpop.permute.xlu0 %931
        %933 = vrot.lane.b32.xlu0 %v884, 104
        %v934 = vpop.permute.xlu0 %933
        %v937 = vpack.c.bf16 %v881, %v881
        %v938 = vpack.c.bf16 %v884, %v884
        %v939 = vpack.c.bf16 %v920, %v920
        %v940 = vpack.c.bf16 %v922, %v922
        %v941 = vpack.c.bf16 %v926, %v926
        %v942 = vpack.c.bf16 %v928, %v928
        %v943 = vpack.c.bf16 %v932, %v932
        %v944 = vpack.c.bf16 %v934, %v934
        %946 = vrot.lane.b32.xlu0 %v937, 96
        %v947 = vpop.permute.xlu0 %946
        %vm948 = vcmask 64512
        %v950 = vsel %vm948, %v909, 0
        %v953 = vsel %vm948, %v947, 0
        %955 = vmatprep.subr.bf16.mxu0 0
        %956 = vmatpush1.bf16.xpose.msra.mxu0 %v953
        %957 = vmatprep.subr.bf16.mxu0 0
        %958 = vmatpush1.bf16.xpose.msra.mxu0 0
        %959 = vmatprep.subr.bf16.mxu0 0
        %960 = vmatpush1.bf16.xpose.msra.mxu0 0
        %961 = vmatprep.subr.bf16.mxu0 0
        %962 = vmatpush1.bf16.xpose.msra.mxu0 0
        %963 = vmatprep.subr.bf16.mxu0 0
        %964 = vmatpush1.bf16.xpose.msra.mxu0 0
        %965 = vmatprep.subr.bf16.mxu0 0
        %966 = vmatpush1.bf16.xpose.msra.mxu0 0
        %967 = vmatprep.subr.bf16.mxu0 0
        %968 = vmatpush1.bf16.xpose.msra.mxu0 0
        %969 = vmatprep.subr.bf16.mxu0 0
        %970 = vmatpush1.bf16.xpose.msra.mxu0 0
        %971 = vmatprep.subr.bf16.mxu0 0
        %972 = vmatpush1.bf16.xpose.msra.mxu0 0
        %973 = vmatprep.subr.bf16.mxu0 0
        %974 = vmatpush1.bf16.xpose.msra.mxu0 0
        %975 = vmatprep.subr.bf16.mxu0 0
        %976 = vmatpush1.bf16.xpose.msra.mxu0 0
        %977 = vmatprep.subr.bf16.mxu0 0
        %978 = vmatpush1.bf16.xpose.msra.mxu0 0
        %979 = vmatprep.subr.bf16.mxu0 0
        %980 = vmatpush1.bf16.xpose.msra.mxu0 0
        %981 = vmatprep.subr.bf16.mxu0 0
        %982 = vmatpush1.bf16.xpose.msra.mxu0 0
        %983 = vmatprep.subr.bf16.mxu0 0
        %984 = vmatpush1.bf16.xpose.msra.mxu0 0
        %985 = vmatprep.subr.bf16.mxu0 0
        %986 = vmatpush1.bf16.xpose.msra.mxu0 0
        %987 = vmatprep.mubr.bf16.mxu0 0
        %988 = vmatmul.mubr.bf16.gmra.mrb[0].mxu0 %v950
        %v989 = vpop.f32.mrb[0].mxu0
        %v990 = vadd.f32 0.0, %v989
        %v991 = vpop.f32.mrb[0].mxu0
        %v992 = vpop.f32.mrb[0].mxu0
        %v993 = vpop.f32.mrb[0].mxu0
        %994 = vdwg.mxu0
        %996 = vrot.lane.b32.xlu0 %v938, 96
        %v997 = vpop.permute.xlu0 %996
        %v999 = vsel %vm948, %v910, 0
        %v1002 = vsel %vm948, %v997, 0
        %1004 = vmatprep.subr.bf16.mxu0 0
        %1005 = vmatpush1.bf16.xpose.msra.mxu0 %v1002
        %1006 = vmatprep.subr.bf16.mxu0 0
        %1007 = vmatpush1.bf16.xpose.msra.mxu0 0
        %1008 = vmatprep.subr.bf16.mxu0 0
        %1009 = vmatpush1.bf16.xpose.msra.mxu0 0
        %1010 = vmatprep.subr.bf16.mxu0 0
        %1011 = vmatpush1.bf16.xpose.msra.mxu0 0
        %1012 = vmatprep.subr.bf16.mxu0 0
        %1013 = vmatpush1.bf16.xpose.msra.mxu0 0
        %1014 = vmatprep.subr.bf16.mxu0 0
        %1015 = vmatpush1.bf16.xpose.msra.mxu0 0
        %1016 = vmatprep.subr.bf16.mxu0 0
        %1017 = vmatpush1.bf16.xpose.msra.mxu0 0
        %1018 = vmatprep.subr.bf16.mxu0 0
        %1019 = vmatpush1.bf16.xpose.msra.mxu0 0
        %1020 = vmatprep.subr.bf16.mxu0 0
        %1021 = vmatpush1.bf16.xpose.msra.mxu0 0
        %1022 = vmatprep.subr.bf16.mxu0 0
        %1023 = vmatpush1.bf16.xpose.msra.mxu0 0
        %1024 = vmatprep.subr.bf16.mxu0 0
        %1025 = vmatpush1.bf16.xpose.msra.mxu0 0
        %1026 = vmatprep.subr.bf16.mxu0 0
        %1027 = vmatpush1.bf16.xpose.msra.mxu0 0
        %1028 = vmatprep.subr.bf16.mxu0 0
        %1029 = vmatpush1.bf16.xpose.msra.mxu0 0
        %1030 = vmatprep.subr.bf16.mxu0 0
        %1031 = vmatpush1.bf16.xpose.msra.mxu0 0
        %1032 = vmatprep.subr.bf16.mxu0 0
        %1033 = vmatpush1.bf16.xpose.msra.mxu0 0
        %1034 = vmatprep.subr.bf16.mxu0 0
        %1035 = vmatpush1.bf16.xpose.msra.mxu0 0
        %1036 = vmatprep.mubr.bf16.mxu0 0
        %1037 = vmatmul.mubr.bf16.gmra.mrb[0].mxu0 %v999
        %v1038 = vpop.f32.mrb[0].mxu0
        %v1039 = vadd.f32 0.0, %v1038
        %v1040 = vpop.f32.mrb[0].mxu0
        %v1041 = vpop.f32.mrb[0].mxu0
        %v1042 = vpop.f32.mrb[0].mxu0
        %1043 = vdwg.mxu0
        %1045 = vrot.lane.b32.xlu0 %v939, 96
        %v1046 = vpop.permute.xlu0 %1045
        %v1048 = vsel %vm948, %v911, 0
        %v1051 = vsel %vm948, %v1046, 0
        %1053 = vmatprep.subr.bf16.mxu0 0
        %1054 = vmatpush1.bf16.xpose.msra.mxu0 %v1051
        %1055 = vmatprep.subr.bf16.mxu0 0
        %1056 = vmatpush1.bf16.xpose.msra.mxu0 0
        %1057 = vmatprep.subr.bf16.mxu0 0
        %1058 = vmatpush1.bf16.xpose.msra.mxu0 0
        %1059 = vmatprep.subr.bf16.mxu0 0
        %1060 = vmatpush1.bf16.xpose.msra.mxu0 0
        %1061 = vmatprep.subr.bf16.mxu0 0
        %1062 = vmatpush1.bf16.xpose.msra.mxu0 0
        %1063 = vmatprep.subr.bf16.mxu0 0
        %1064 = vmatpush1.bf16.xpose.msra.mxu0 0
        %1065 = vmatprep.subr.bf16.mxu0 0
        %1066 = vmatpush1.bf16.xpose.msra.mxu0 0
        %1067 = vmatprep.subr.bf16.mxu0 0
        %1068 = vmatpush1.bf16.xpose.msra.mxu0 0
        %1069 = vmatprep.subr.bf16.mxu0 0
        %1070 = vmatpush1.bf16.xpose.msra.mxu0 0
        %1071 = vmatprep.subr.bf16.mxu0 0
        %1072 = vmatpush1.bf16.xpose.msra.mxu0 0
        %1073 = vmatprep.subr.bf16.mxu0 0
        %1074 = vmatpush1.bf16.xpose.msra.mxu0 0
        %1075 = vmatprep.subr.bf16.mxu0 0
        %1076 = vmatpush1.bf16.xpose.msra.mxu0 0
        %1077 = vmatprep.subr.bf16.mxu0 0
        %1078 = vmatpush1.bf16.xpose.msra.mxu0 0
        %1079 = vmatprep.subr.bf16.mxu0 0
        %1080 = vmatpush1.bf16.xpose.msra.mxu0 0
        %1081 = vmatprep.subr.bf16.mxu0 0
        %1082 = vmatpush1.bf16.xpose.msra.mxu0 0
        %1083 = vmatprep.subr.bf16.mxu0 0
        %1084 = vmatpush1.bf16.xpose.msra.mxu0 0
        %1085 = vmatprep.mubr.bf16.mxu0 0
        %1086 = vmatmul.mubr.bf16.gmra.mrb[0].mxu0 %v1048
        %v1087 = vpop.f32.mrb[0].mxu0
        %v1088 = vadd.f32 0.0, %v1087
        %v1089 = vpop.f32.mrb[0].mxu0
        %v1090 = vpop.f32.mrb[0].mxu0
        %v1091 = vpop.f32.mrb[0].mxu0
        %1092 = vdwg.mxu0
        %1094 = vrot.lane.b32.xlu0 %v940, 96
        %v1095 = vpop.permute.xlu0 %1094
        %v1097 = vsel %vm948, %v912, 0
        %v1100 = vsel %vm948, %v1095, 0
        %1102 = vmatprep.subr.bf16.mxu0 0
        %1103 = vmatpush1.bf16.xpose.msra.mxu0 %v1100
        %1104 = vmatprep.subr.bf16.mxu0 0
        %1105 = vmatpush1.bf16.xpose.msra.mxu0 0
        %1106 = vmatprep.subr.bf16.mxu0 0
        %1107 = vmatpush1.bf16.xpose.msra.mxu0 0
        %1108 = vmatprep.subr.bf16.mxu0 0
        %1109 = vmatpush1.bf16.xpose.msra.mxu0 0
        %1110 = vmatprep.subr.bf16.mxu0 0
        %1111 = vmatpush1.bf16.xpose.msra.mxu0 0
        %1112 = vmatprep.subr.bf16.mxu0 0
        %1113 = vmatpush1.bf16.xpose.msra.mxu0 0
        %1114 = vmatprep.subr.bf16.mxu0 0
        %1115 = vmatpush1.bf16.xpose.msra.mxu0 0
        %1116 = vmatprep.subr.bf16.mxu0 0
        %1117 = vmatpush1.bf16.xpose.msra.mxu0 0
        %1118 = vmatprep.subr.bf16.mxu0 0
        %1119 = vmatpush1.bf16.xpose.msra.mxu0 0
        %1120 = vmatprep.subr.bf16.mxu0 0
        %1121 = vmatpush1.bf16.xpose.msra.mxu0 0
        %1122 = vmatprep.subr.bf16.mxu0 0
        %1123 = vmatpush1.bf16.xpose.msra.mxu0 0
        %1124 = vmatprep.subr.bf16.mxu0 0
        %1125 = vmatpush1.bf16.xpose.msra.mxu0 0
        %1126 = vmatprep.subr.bf16.mxu0 0
        %1127 = vmatpush1.bf16.xpose.msra.mxu0 0
        %1128 = vmatprep.subr.bf16.mxu0 0
        %1129 = vmatpush1.bf16.xpose.msra.mxu0 0
        %1130 = vmatprep.subr.bf16.mxu0 0
        %1131 = vmatpush1.bf16.xpose.msra.mxu0 0
        %1132 = vmatprep.subr.bf16.mxu0 0
        %1133 = vmatpush1.bf16.xpose.msra.mxu0 0
        %1134 = vmatprep.mubr.bf16.mxu0 0
        %1135 = vmatmul.mubr.bf16.gmra.mrb[0].mxu0 %v1097
        %v1136 = vpop.f32.mrb[0].mxu0
        %v1137 = vadd.f32 0.0, %v1136
        %v1138 = vpop.f32.mrb[0].mxu0
        %v1139 = vpop.f32.mrb[0].mxu0
        %v1140 = vpop.f32.mrb[0].mxu0
        %1141 = vdwg.mxu0
        %1143 = vrot.lane.b32.xlu0 %v941, 96
        %v1144 = vpop.permute.xlu0 %1143
        %v1146 = vsel %vm948, %v913, 0
        %v1149 = vsel %vm948, %v1144, 0
        %1151 = vmatprep.subr.bf16.mxu0 0
        %1152 = vmatpush1.bf16.xpose.msra.mxu0 %v1149
        %1153 = vmatprep.subr.bf16.mxu0 0
        %1154 = vmatpush1.bf16.xpose.msra.mxu0 0
        %1155 = vmatprep.subr.bf16.mxu0 0
        %1156 = vmatpush1.bf16.xpose.msra.mxu0 0
        %1157 = vmatprep.subr.bf16.mxu0 0
        %1158 = vmatpush1.bf16.xpose.msra.mxu0 0
        %1159 = vmatprep.subr.bf16.mxu0 0
        %1160 = vmatpush1.bf16.xpose.msra.mxu0 0
        %1161 = vmatprep.subr.bf16.mxu0 0
        %1162 = vmatpush1.bf16.xpose.msra.mxu0 0
        %1163 = vmatprep.subr.bf16.mxu0 0
        %1164 = vmatpush1.bf16.xpose.msra.mxu0 0
        %1165 = vmatprep.subr.bf16.mxu0 0
        %1166 = vmatpush1.bf16.xpose.msra.mxu0 0
        %1167 = vmatprep.subr.bf16.mxu0 0
        %1168 = vmatpush1.bf16.xpose.msra.mxu0 0
        %1169 = vmatprep.subr.bf16.mxu0 0
        %1170 = vmatpush1.bf16.xpose.msra.mxu0 0
        %1171 = vmatprep.subr.bf16.mxu0 0
        %1172 = vmatpush1.bf16.xpose.msra.mxu0 0
        %1173 = vmatprep.subr.bf16.mxu0 0
        %1174 = vmatpush1.bf16.xpose.msra.mxu0 0
        %1175 = vmatprep.subr.bf16.mxu0 0
        %1176 = vmatpush1.bf16.xpose.msra.mxu0 0
        %1177 = vmatprep.subr.bf16.mxu0 0
        %1178 = vmatpush1.bf16.xpose.msra.mxu0 0
        %1179 = vmatprep.subr.bf16.mxu0 0
        %1180 = vmatpush1.bf16.xpose.msra.mxu0 0
        %1181 = vmatprep.subr.bf16.mxu0 0
        %1182 = vmatpush1.bf16.xpose.msra.mxu0 0
        %1183 = vmatprep.mubr.bf16.mxu0 0
        %1184 = vmatmul.mubr.bf16.gmra.mrb[0].mxu0 %v1146
        %v1185 = vpop.f32.mrb[0].mxu0
        %v1186 = vadd.f32 0.0, %v1185
        %v1187 = vpop.f32.mrb[0].mxu0
        %v1188 = vpop.f32.mrb[0].mxu0
        %v1189 = vpop.f32.mrb[0].mxu0
        %1190 = vdwg.mxu0
        %1192 = vrot.lane.b32.xlu0 %v942, 96
        %v1193 = vpop.permute.xlu0 %1192
        %v1195 = vsel %vm948, %v914, 0
        %v1198 = vsel %vm948, %v1193, 0
        %1200 = vmatprep.subr.bf16.mxu0 0
        %1201 = vmatpush1.bf16.xpose.msra.mxu0 %v1198
        %1202 = vmatprep.subr.bf16.mxu0 0
        %1203 = vmatpush1.bf16.xpose.msra.mxu0 0
        %1204 = vmatprep.subr.bf16.mxu0 0
        %1205 = vmatpush1.bf16.xpose.msra.mxu0 0
        %1206 = vmatprep.subr.bf16.mxu0 0
        %1207 = vmatpush1.bf16.xpose.msra.mxu0 0
        %1208 = vmatprep.subr.bf16.mxu0 0
        %1209 = vmatpush1.bf16.xpose.msra.mxu0 0
        %1210 = vmatprep.subr.bf16.mxu0 0
        %1211 = vmatpush1.bf16.xpose.msra.mxu0 0
        %1212 = vmatprep.subr.bf16.mxu0 0
        %1213 = vmatpush1.bf16.xpose.msra.mxu0 0
        %1214 = vmatprep.subr.bf16.mxu0 0
        %1215 = vmatpush1.bf16.xpose.msra.mxu0 0
        %1216 = vmatprep.subr.bf16.mxu0 0
        %1217 = vmatpush1.bf16.xpose.msra.mxu0 0
        %1218 = vmatprep.subr.bf16.mxu0 0
        %1219 = vmatpush1.bf16.xpose.msra.mxu0 0
        %1220 = vmatprep.subr.bf16.mxu0 0
        %1221 = vmatpush1.bf16.xpose.msra.mxu0 0
        %1222 = vmatprep.subr.bf16.mxu0 0
        %1223 = vmatpush1.bf16.xpose.msra.mxu0 0
        %1224 = vmatprep.subr.bf16.mxu0 0
        %1225 = vmatpush1.bf16.xpose.msra.mxu0 0
        %1226 = vmatprep.subr.bf16.mxu0 0
        %1227 = vmatpush1.bf16.xpose.msra.mxu0 0
        %1228 = vmatprep.subr.bf16.mxu0 0
        %1229 = vmatpush1.bf16.xpose.msra.mxu0 0
        %1230 = vmatprep.subr.bf16.mxu0 0
        %1231 = vmatpush1.bf16.xpose.msra.mxu0 0
        %1232 = vmatprep.mubr.bf16.mxu0 0
        %1233 = vmatmul.mubr.bf16.gmra.mrb[0].mxu0 %v1195
        %v1234 = vpop.f32.mrb[0].mxu0
        %v1235 = vadd.f32 0.0, %v1234
        %v1236 = vpop.f32.mrb[0].mxu0
        %v1237 = vpop.f32.mrb[0].mxu0
        %v1238 = vpop.f32.mrb[0].mxu0
        %1239 = vdwg.mxu0
        %1241 = vrot.lane.b32.xlu0 %v943, 96
        %v1242 = vpop.permute.xlu0 %1241
        %v1244 = vsel %vm948, %v915, 0
        %v1247 = vsel %vm948, %v1242, 0
        %1249 = vmatprep.subr.bf16.mxu0 0
        %1250 = vmatpush1.bf16.xpose.msra.mxu0 %v1247
        %1251 = vmatprep.subr.bf16.mxu0 0
        %1252 = vmatpush1.bf16.xpose.msra.mxu0 0
        %1253 = vmatprep.subr.bf16.mxu0 0
        %1254 = vmatpush1.bf16.xpose.msra.mxu0 0
        %1255 = vmatprep.subr.bf16.mxu0 0
        %1256 = vmatpush1.bf16.xpose.msra.mxu0 0
        %1257 = vmatprep.subr.bf16.mxu0 0
        %1258 = vmatpush1.bf16.xpose.msra.mxu0 0
        %1259 = vmatprep.subr.bf16.mxu0 0
        %1260 = vmatpush1.bf16.xpose.msra.mxu0 0
        %1261 = vmatprep.subr.bf16.mxu0 0
        %1262 = vmatpush1.bf16.xpose.msra.mxu0 0
        %1263 = vmatprep.subr.bf16.mxu0 0
        %1264 = vmatpush1.bf16.xpose.msra.mxu0 0
        %1265 = vmatprep.subr.bf16.mxu0 0
        %1266 = vmatpush1.bf16.xpose.msra.mxu0 0
        %1267 = vmatprep.subr.bf16.mxu0 0
        %1268 = vmatpush1.bf16.xpose.msra.mxu0 0
        %1269 = vmatprep.subr.bf16.mxu0 0
        %1270 = vmatpush1.bf16.xpose.msra.mxu0 0
        %1271 = vmatprep.subr.bf16.mxu0 0
        %1272 = vmatpush1.bf16.xpose.msra.mxu0 0
        %1273 = vmatprep.subr.bf16.mxu0 0
        %1274 = vmatpush1.bf16.xpose.msra.mxu0 0
        %1275 = vmatprep.subr.bf16.mxu0 0
        %1276 = vmatpush1.bf16.xpose.msra.mxu0 0
        %1277 = vmatprep.subr.bf16.mxu0 0
        %1278 = vmatpush1.bf16.xpose.msra.mxu0 0
        %1279 = vmatprep.subr.bf16.mxu0 0
        %1280 = vmatpush1.bf16.xpose.msra.mxu0 0
        %1281 = vmatprep.mubr.bf16.mxu0 0
        %1282 = vmatmul.mubr.bf16.gmra.mrb[0].mxu0 %v1244
        %v1283 = vpop.f32.mrb[0].mxu0
        %v1284 = vadd.f32 0.0, %v1283
        %v1285 = vpop.f32.mrb[0].mxu0
        %v1286 = vpop.f32.mrb[0].mxu0
        %v1287 = vpop.f32.mrb[0].mxu0
        %1288 = vdwg.mxu0
        %1290 = vrot.lane.b32.xlu0 %v944, 96
        %v1291 = vpop.permute.xlu0 %1290
        %v1293 = vsel %vm948, %v916, 0
        %v1296 = vsel %vm948, %v1291, 0
        %1298 = vmatprep.subr.bf16.mxu0 0
        %1299 = vmatpush1.bf16.xpose.msra.mxu0 %v1296
        %1300 = vmatprep.subr.bf16.mxu0 0
        %1301 = vmatpush1.bf16.xpose.msra.mxu0 0
        %1302 = vmatprep.subr.bf16.mxu0 0
        %1303 = vmatpush1.bf16.xpose.msra.mxu0 0
        %1304 = vmatprep.subr.bf16.mxu0 0
        %1305 = vmatpush1.bf16.xpose.msra.mxu0 0
        %1306 = vmatprep.subr.bf16.mxu0 0
        %1307 = vmatpush1.bf16.xpose.msra.mxu0 0
        %1308 = vmatprep.subr.bf16.mxu0 0
        %1309 = vmatpush1.bf16.xpose.msra.mxu0 0
        %1310 = vmatprep.subr.bf16.mxu0 0
        %1311 = vmatpush1.bf16.xpose.msra.mxu0 0
        %1312 = vmatprep.subr.bf16.mxu0 0
        %1313 = vmatpush1.bf16.xpose.msra.mxu0 0
        %1314 = vmatprep.subr.bf16.mxu0 0
        %1315 = vmatpush1.bf16.xpose.msra.mxu0 0
        %1316 = vmatprep.subr.bf16.mxu0 0
        %1317 = vmatpush1.bf16.xpose.msra.mxu0 0
        %1318 = vmatprep.subr.bf16.mxu0 0
        %1319 = vmatpush1.bf16.xpose.msra.mxu0 0
        %1320 = vmatprep.subr.bf16.mxu0 0
        %1321 = vmatpush1.bf16.xpose.msra.mxu0 0
        %1322 = vmatprep.subr.bf16.mxu0 0
        %1323 = vmatpush1.bf16.xpose.msra.mxu0 0
        %1324 = vmatprep.subr.bf16.mxu0 0
        %1325 = vmatpush1.bf16.xpose.msra.mxu0 0
        %1326 = vmatprep.subr.bf16.mxu0 0
        %1327 = vmatpush1.bf16.xpose.msra.mxu0 0
        %1328 = vmatprep.subr.bf16.mxu0 0
        %1329 = vmatpush1.bf16.xpose.msra.mxu0 0
        %1330 = vmatprep.mubr.bf16.mxu0 0
        %1331 = vmatmul.mubr.bf16.gmra.mrb[0].mxu0 %v1293
        %v1332 = vpop.f32.mrb[0].mxu0
        %v1333 = vadd.f32 0.0, %v1332
        %v1334 = vpop.f32.mrb[0].mxu0
        %v1335 = vpop.f32.mrb[0].mxu0
        %v1336 = vpop.f32.mrb[0].mxu0
        %1337 = vdwg.mxu0
        %v1338 = vsel %vm770, 1, 0
        %vm1339 = vcmp.eq.s32.totalorder %v1338, 1
        %v1340 = vsel %vm1339, %v990, -1e+09
        %v1341 = vsel %vm1339, %v1039, -1e+09
        %v1342 = vsel %vm1339, %v1088, -1e+09
        %v1343 = vsel %vm1339, %v1137, -1e+09
        %v1344 = vsel %vm1339, %v1186, -1e+09
        %v1345 = vsel %vm1339, %v1235, -1e+09
        %v1346 = vsel %vm1339, %v1284, -1e+09
        %v1347 = vsel %vm1339, %v1333, -1e+09
        %v1348 = vsel %vm948, %v1340, -inf
        %1349 = vmax.xlane.f32.xlu0 %v1348
        %v1350 = vpop.xlane.xlu0 %1349
        %v1351 = vsel %vm948, %v1341, -inf
        %1352 = vmax.xlane.f32.xlu0 %v1351
        %v1353 = vpop.xlane.xlu0 %1352
        %v1354 = vsel %vm948, %v1342, -inf
        %1355 = vmax.xlane.f32.xlu0 %v1354
        %v1356 = vpop.xlane.xlu0 %1355
        %v1357 = vsel %vm948, %v1343, -inf
        %1358 = vmax.xlane.f32.xlu0 %v1357
        %v1359 = vpop.xlane.xlu0 %1358
        %v1360 = vsel %vm948, %v1344, -inf
        %1361 = vmax.xlane.f32.xlu0 %v1360
        %v1362 = vpop.xlane.xlu0 %1361
        %v1363 = vsel %vm948, %v1345, -inf
        %1364 = vmax.xlane.f32.xlu0 %v1363
        %v1365 = vpop.xlane.xlu0 %1364
        %v1366 = vsel %vm948, %v1346, -inf
        %1367 = vmax.xlane.f32.xlu0 %v1366
        %v1368 = vpop.xlane.xlu0 %1367
        %v1369 = vsel %vm948, %v1347, -inf
        %1370 = vmax.xlane.f32.xlu0 %v1369
        %v1371 = vpop.xlane.xlu0 %1370
        %v1372 = vsub.f32 %v1340, %v1350
        %v1373 = vsub.f32 %v1341, %v1353
        %v1374 = vsub.f32 %v1342, %v1356
        %v1375 = vsub.f32 %v1343, %v1359
        %v1376 = vsub.f32 %v1344, %v1362
        %v1377 = vsub.f32 %v1345, %v1365
        %v1378 = vsub.f32 %v1346, %v1368
        %v1379 = vsub.f32 %v1347, %v1371
        %v1380 = vmul.f32 %v1372, 1.442695
        %v1381 = vpow.pop %v1380
        %v1382 = vmul.f32 %v1373, 1.442695
        %v1383 = vpow.pop %v1382
        %v1384 = vmul.f32 %v1374, 1.442695
        %v1385 = vpow.pop %v1384
        %v1386 = vmul.f32 %v1375, 1.442695
        %v1387 = vpow.pop %v1386
        %v1388 = vmul.f32 %v1376, 1.442695
        %v1389 = vpow.pop %v1388
        %v1390 = vmul.f32 %v1377, 1.442695
        %v1391 = vpow.pop %v1390
        %v1392 = vmul.f32 %v1378, 1.442695
        %v1393 = vpow.pop %v1392
        %v1394 = vmul.f32 %v1379, 1.442695
        %v1395 = vpow.pop %v1394
        %v1396 = vsel %vm948, %v1381, 0.0
        %1397 = vadd.xlane.f32.xlu0 %v1396
        %v1398 = vpop.xlane.xlu0 %1397
        %v1399 = vsel %vm948, %v1383, 0.0
        %1400 = vadd.xlane.f32.xlu0 %v1399
        %v1401 = vpop.xlane.xlu0 %1400
        %v1402 = vsel %vm948, %v1385, 0.0
        %1403 = vadd.xlane.f32.xlu0 %v1402
        %v1404 = vpop.xlane.xlu0 %1403
        %v1405 = vsel %vm948, %v1387, 0.0
        %1406 = vadd.xlane.f32.xlu0 %v1405
        %v1407 = vpop.xlane.xlu0 %1406
        %v1408 = vsel %vm948, %v1389, 0.0
        %1409 = vadd.xlane.f32.xlu0 %v1408
        %v1410 = vpop.xlane.xlu0 %1409
        %v1411 = vsel %vm948, %v1391, 0.0
        %1412 = vadd.xlane.f32.xlu0 %v1411
        %v1413 = vpop.xlane.xlu0 %1412
        %v1414 = vsel %vm948, %v1393, 0.0
        %1415 = vadd.xlane.f32.xlu0 %v1414
        %v1416 = vpop.xlane.xlu0 %1415
        %v1417 = vsel %vm948, %v1395, 0.0
        %1418 = vadd.xlane.f32.xlu0 %v1417
        %v1419 = vpop.xlane.xlu0 %1418
        %v1420 = vrcp.pop %v1398
        %v1421 = vrcp.pop %v1401
        %v1422 = vrcp.pop %v1404
        %v1423 = vrcp.pop %v1407
        %v1424 = vrcp.pop %v1410
        %v1425 = vrcp.pop %v1413
        %v1426 = vrcp.pop %v1416
        %v1427 = vrcp.pop %v1419
        %v1428 = vmul.f32 %v1381, %v1420
        %v1429 = vmul.f32 %v1383, %v1421
        %v1430 = vmul.f32 %v1385, %v1422
        %v1431 = vmul.f32 %v1387, %v1423
        %v1432 = vmul.f32 %v1389, %v1424
        %v1433 = vmul.f32 %v1391, %v1425
        %v1434 = vmul.f32 %v1393, %v1426
        %v1435 = vmul.f32 %v1395, %v1427
        %v1436 = vpack.c.bf16 %v1428, %v1428
        %v1437 = vpack.c.bf16 %v1429, %v1429
        %v1438 = vpack.c.bf16 %v1430, %v1430
        %v1439 = vpack.c.bf16 %v1431, %v1431
        %v1440 = vpack.c.bf16 %v1432, %v1432
        %v1441 = vpack.c.bf16 %v1433, %v1433
        %v1442 = vpack.c.bf16 %v1434, %v1434
        %v1443 = vpack.c.bf16 %v1435, %v1435
        %1444 = vrot.lane.b32.xlu0 %v937, 64
        %v1445 = vpop.permute.xlu0 %1444
        %v1447 = vsel %vm948, %v1436, 0
        %vm1449 = vcmask 1043456
        %v1451 = vsel %vm1449, %v1445, 0
        %1453 = vmatprep.subr.bf16.mxu0 0
        %1454 = vmatpush1.bf16.msra.mxu0 %v1451
        %1455 = vmatprep.subr.bf16.mxu0 0
        %1456 = vmatpush1.bf16.msra.mxu0 0
        %1457 = vmatprep.subr.bf16.mxu0 0
        %1458 = vmatpush1.bf16.msra.mxu0 0
        %1459 = vmatprep.subr.bf16.mxu0 0
        %1460 = vmatpush1.bf16.msra.mxu0 0
        %1461 = vmatprep.subr.bf16.mxu0 0
        %1462 = vmatpush1.bf16.msra.mxu0 0
        %1463 = vmatprep.subr.bf16.mxu0 0
        %1464 = vmatpush1.bf16.msra.mxu0 0
        %1465 = vmatprep.subr.bf16.mxu0 0
        %1466 = vmatpush1.bf16.msra.mxu0 0
        %1467 = vmatprep.subr.bf16.mxu0 0
        %1468 = vmatpush1.bf16.msra.mxu0 0
        %1469 = vmatprep.subr.bf16.mxu0 0
        %1470 = vmatpush1.bf16.msra.mxu0 0
        %1471 = vmatprep.subr.bf16.mxu0 0
        %1472 = vmatpush1.bf16.msra.mxu0 0
        %1473 = vmatprep.subr.bf16.mxu0 0
        %1474 = vmatpush1.bf16.msra.mxu0 0
        %1475 = vmatprep.subr.bf16.mxu0 0
        %1476 = vmatpush1.bf16.msra.mxu0 0
        %1477 = vmatprep.subr.bf16.mxu0 0
        %1478 = vmatpush1.bf16.msra.mxu0 0
        %1479 = vmatprep.subr.bf16.mxu0 0
        %1480 = vmatpush1.bf16.msra.mxu0 0
        %1481 = vmatprep.subr.bf16.mxu0 0
        %1482 = vmatpush1.bf16.msra.mxu0 0
        %1483 = vmatprep.subr.bf16.mxu0 0
        %1484 = vmatpush1.bf16.msra.mxu0 0
        %1485 = vmatprep.mubr.bf16.mxu0 0
        %1486 = vmatmul.mubr.bf16.gmra.mrb[0].mxu0 %v1447
        %v1487 = vpop.f32.mrb[0].mxu0
        %v1488 = vadd.f32 0.0, %v1487
        %v1489 = vpop.f32.mrb[0].mxu0
        %v1490 = vpop.f32.mrb[0].mxu0
        %v1491 = vpop.f32.mrb[0].mxu0
        %1492 = vdwg.mxu0
        %1493 = vrot.lane.b32.xlu0 %v938, 64
        %v1494 = vpop.permute.xlu0 %1493
        %v1496 = vsel %vm948, %v1437, 0
        %v1499 = vsel %vm1449, %v1494, 0
        %1501 = vmatprep.subr.bf16.mxu0 0
        %1502 = vmatpush1.bf16.msra.mxu0 %v1499
        %1503 = vmatprep.subr.bf16.mxu0 0
        %1504 = vmatpush1.bf16.msra.mxu0 0
        %1505 = vmatprep.subr.bf16.mxu0 0
        %1506 = vmatpush1.bf16.msra.mxu0 0
        %1507 = vmatprep.subr.bf16.mxu0 0
        %1508 = vmatpush1.bf16.msra.mxu0 0
        %1509 = vmatprep.subr.bf16.mxu0 0
        %1510 = vmatpush1.bf16.msra.mxu0 0
        %1511 = vmatprep.subr.bf16.mxu0 0
        %1512 = vmatpush1.bf16.msra.mxu0 0
        %1513 = vmatprep.subr.bf16.mxu0 0
        %1514 = vmatpush1.bf16.msra.mxu0 0
        %1515 = vmatprep.subr.bf16.mxu0 0
        %1516 = vmatpush1.bf16.msra.mxu0 0
        %1517 = vmatprep.subr.bf16.mxu0 0
        %1518 = vmatpush1.bf16.msra.mxu0 0
        %1519 = vmatprep.subr.bf16.mxu0 0
        %1520 = vmatpush1.bf16.msra.mxu0 0
        %1521 = vmatprep.subr.bf16.mxu0 0
        %1522 = vmatpush1.bf16.msra.mxu0 0
        %1523 = vmatprep.subr.bf16.mxu0 0
        %1524 = vmatpush1.bf16.msra.mxu0 0
        %1525 = vmatprep.subr.bf16.mxu0 0
        %1526 = vmatpush1.bf16.msra.mxu0 0
        %1527 = vmatprep.subr.bf16.mxu0 0
        %1528 = vmatpush1.bf16.msra.mxu0 0
        %1529 = vmatprep.subr.bf16.mxu0 0
        %1530 = vmatpush1.bf16.msra.mxu0 0
        %1531 = vmatprep.subr.bf16.mxu0 0
        %1532 = vmatpush1.bf16.msra.mxu0 0
        %1533 = vmatprep.mubr.bf16.mxu0 0
        %1534 = vmatmul.mubr.bf16.gmra.mrb[0].mxu0 %v1496
        %v1535 = vpop.f32.mrb[0].mxu0
        %v1536 = vadd.f32 0.0, %v1535
        %v1537 = vpop.f32.mrb[0].mxu0
        %v1538 = vpop.f32.mrb[0].mxu0
        %v1539 = vpop.f32.mrb[0].mxu0
        %1540 = vdwg.mxu0
        %1541 = vrot.lane.b32.xlu0 %v939, 64
        %v1542 = vpop.permute.xlu0 %1541
        %v1544 = vsel %vm948, %v1438, 0
        %v1547 = vsel %vm1449, %v1542, 0
        %1549 = vmatprep.subr.bf16.mxu0 0
        %1550 = vmatpush1.bf16.msra.mxu0 %v1547
        %1551 = vmatprep.subr.bf16.mxu0 0
        %1552 = vmatpush1.bf16.msra.mxu0 0
        %1553 = vmatprep.subr.bf16.mxu0 0
        %1554 = vmatpush1.bf16.msra.mxu0 0
        %1555 = vmatprep.subr.bf16.mxu0 0
        %1556 = vmatpush1.bf16.msra.mxu0 0
        %1557 = vmatprep.subr.bf16.mxu0 0
        %1558 = vmatpush1.bf16.msra.mxu0 0
        %1559 = vmatprep.subr.bf16.mxu0 0
        %1560 = vmatpush1.bf16.msra.mxu0 0
        %1561 = vmatprep.subr.bf16.mxu0 0
        %1562 = vmatpush1.bf16.msra.mxu0 0
        %1563 = vmatprep.subr.bf16.mxu0 0
        %1564 = vmatpush1.bf16.msra.mxu0 0
        %1565 = vmatprep.subr.bf16.mxu0 0
        %1566 = vmatpush1.bf16.msra.mxu0 0
        %1567 = vmatprep.subr.bf16.mxu0 0
        %1568 = vmatpush1.bf16.msra.mxu0 0
        %1569 = vmatprep.subr.bf16.mxu0 0
        %1570 = vmatpush1.bf16.msra.mxu0 0
        %1571 = vmatprep.subr.bf16.mxu0 0
        %1572 = vmatpush1.bf16.msra.mxu0 0
        %1573 = vmatprep.subr.bf16.mxu0 0
        %1574 = vmatpush1.bf16.msra.mxu0 0
        %1575 = vmatprep.subr.bf16.mxu0 0
        %1576 = vmatpush1.bf16.msra.mxu0 0
        %1577 = vmatprep.subr.bf16.mxu0 0
        %1578 = vmatpush1.bf16.msra.mxu0 0
        %1579 = vmatprep.subr.bf16.mxu0 0
        %1580 = vmatpush1.bf16.msra.mxu0 0
        %1581 = vmatprep.mubr.bf16.mxu0 0
        %1582 = vmatmul.mubr.bf16.gmra.mrb[0].mxu0 %v1544
        %v1583 = vpop.f32.mrb[0].mxu0
        %v1584 = vadd.f32 0.0, %v1583
        %v1585 = vpop.f32.mrb[0].mxu0
        %v1586 = vpop.f32.mrb[0].mxu0
        %v1587 = vpop.f32.mrb[0].mxu0
        %1588 = vdwg.mxu0
        %1589 = vrot.lane.b32.xlu0 %v940, 64
        %v1590 = vpop.permute.xlu0 %1589
        %v1592 = vsel %vm948, %v1439, 0
        %v1595 = vsel %vm1449, %v1590, 0
        %1597 = vmatprep.subr.bf16.mxu0 0
        %1598 = vmatpush1.bf16.msra.mxu0 %v1595
        %1599 = vmatprep.subr.bf16.mxu0 0
        %1600 = vmatpush1.bf16.msra.mxu0 0
        %1601 = vmatprep.subr.bf16.mxu0 0
        %1602 = vmatpush1.bf16.msra.mxu0 0
        %1603 = vmatprep.subr.bf16.mxu0 0
        %1604 = vmatpush1.bf16.msra.mxu0 0
        %1605 = vmatprep.subr.bf16.mxu0 0
        %1606 = vmatpush1.bf16.msra.mxu0 0
        %1607 = vmatprep.subr.bf16.mxu0 0
        %1608 = vmatpush1.bf16.msra.mxu0 0
        %1609 = vmatprep.subr.bf16.mxu0 0
        %1610 = vmatpush1.bf16.msra.mxu0 0
        %1611 = vmatprep.subr.bf16.mxu0 0
        %1612 = vmatpush1.bf16.msra.mxu0 0
        %1613 = vmatprep.subr.bf16.mxu0 0
        %1614 = vmatpush1.bf16.msra.mxu0 0
        %1615 = vmatprep.subr.bf16.mxu0 0
        %1616 = vmatpush1.bf16.msra.mxu0 0
        %1617 = vmatprep.subr.bf16.mxu0 0
        %1618 = vmatpush1.bf16.msra.mxu0 0
        %1619 = vmatprep.subr.bf16.mxu0 0
        %1620 = vmatpush1.bf16.msra.mxu0 0
        %1621 = vmatprep.subr.bf16.mxu0 0
        %1622 = vmatpush1.bf16.msra.mxu0 0
        %1623 = vmatprep.subr.bf16.mxu0 0
        %1624 = vmatpush1.bf16.msra.mxu0 0
        %1625 = vmatprep.subr.bf16.mxu0 0
        %1626 = vmatpush1.bf16.msra.mxu0 0
        %1627 = vmatprep.subr.bf16.mxu0 0
        %1628 = vmatpush1.bf16.msra.mxu0 0
        %1629 = vmatprep.mubr.bf16.mxu0 0
        %1630 = vmatmul.mubr.bf16.gmra.mrb[0].mxu0 %v1592
        %v1631 = vpop.f32.mrb[0].mxu0
        %v1632 = vadd.f32 0.0, %v1631
        %v1633 = vpop.f32.mrb[0].mxu0
        %v1634 = vpop.f32.mrb[0].mxu0
        %v1635 = vpop.f32.mrb[0].mxu0
        %1636 = vdwg.mxu0
        %1637 = vrot.lane.b32.xlu0 %v941, 64
        %v1638 = vpop.permute.xlu0 %1637
        %v1640 = vsel %vm948, %v1440, 0
        %v1643 = vsel %vm1449, %v1638, 0
        %1645 = vmatprep.subr.bf16.mxu0 0
        %1646 = vmatpush1.bf16.msra.mxu0 %v1643
        %1647 = vmatprep.subr.bf16.mxu0 0
        %1648 = vmatpush1.bf16.msra.mxu0 0
        %1649 = vmatprep.subr.bf16.mxu0 0
        %1650 = vmatpush1.bf16.msra.mxu0 0
        %1651 = vmatprep.subr.bf16.mxu0 0
        %1652 = vmatpush1.bf16.msra.mxu0 0
        %1653 = vmatprep.subr.bf16.mxu0 0
        %1654 = vmatpush1.bf16.msra.mxu0 0
        %1655 = vmatprep.subr.bf16.mxu0 0
        %1656 = vmatpush1.bf16.msra.mxu0 0
        %1657 = vmatprep.subr.bf16.mxu0 0
        %1658 = vmatpush1.bf16.msra.mxu0 0
        %1659 = vmatprep.subr.bf16.mxu0 0
        %1660 = vmatpush1.bf16.msra.mxu0 0
        %1661 = vmatprep.subr.bf16.mxu0 0
        %1662 = vmatpush1.bf16.msra.mxu0 0
        %1663 = vmatprep.subr.bf16.mxu0 0
        %1664 = vmatpush1.bf16.msra.mxu0 0
        %1665 = vmatprep.subr.bf16.mxu0 0
        %1666 = vmatpush1.bf16.msra.mxu0 0
        %1667 = vmatprep.subr.bf16.mxu0 0
        %1668 = vmatpush1.bf16.msra.mxu0 0
        %1669 = vmatprep.subr.bf16.mxu0 0
        %1670 = vmatpush1.bf16.msra.mxu0 0
        %1671 = vmatprep.subr.bf16.mxu0 0
        %1672 = vmatpush1.bf16.msra.mxu0 0
        %1673 = vmatprep.subr.bf16.mxu0 0
        %1674 = vmatpush1.bf16.msra.mxu0 0
        %1675 = vmatprep.subr.bf16.mxu0 0
        %1676 = vmatpush1.bf16.msra.mxu0 0
        %1677 = vmatprep.mubr.bf16.mxu0 0
        %1678 = vmatmul.mubr.bf16.gmra.mrb[0].mxu0 %v1640
        %v1679 = vpop.f32.mrb[0].mxu0
        %v1680 = vadd.f32 0.0, %v1679
        %v1681 = vpop.f32.mrb[0].mxu0
        %v1682 = vpop.f32.mrb[0].mxu0
        %v1683 = vpop.f32.mrb[0].mxu0
        %1684 = vdwg.mxu0
        %1685 = vrot.lane.b32.xlu0 %v942, 64
        %v1686 = vpop.permute.xlu0 %1685
        %v1688 = vsel %vm948, %v1441, 0
        %v1691 = vsel %vm1449, %v1686, 0
        %1693 = vmatprep.subr.bf16.mxu0 0
        %1694 = vmatpush1.bf16.msra.mxu0 %v1691
        %1695 = vmatprep.subr.bf16.mxu0 0
        %1696 = vmatpush1.bf16.msra.mxu0 0
        %1697 = vmatprep.subr.bf16.mxu0 0
        %1698 = vmatpush1.bf16.msra.mxu0 0
        %1699 = vmatprep.subr.bf16.mxu0 0
        %1700 = vmatpush1.bf16.msra.mxu0 0
        %1701 = vmatprep.subr.bf16.mxu0 0
        %1702 = vmatpush1.bf16.msra.mxu0 0
        %1703 = vmatprep.subr.bf16.mxu0 0
        %1704 = vmatpush1.bf16.msra.mxu0 0
        %1705 = vmatprep.subr.bf16.mxu0 0
        %1706 = vmatpush1.bf16.msra.mxu0 0
        %1707 = vmatprep.subr.bf16.mxu0 0
        %1708 = vmatpush1.bf16.msra.mxu0 0
        %1709 = vmatprep.subr.bf16.mxu0 0
        %1710 = vmatpush1.bf16.msra.mxu0 0
        %1711 = vmatprep.subr.bf16.mxu0 0
        %1712 = vmatpush1.bf16.msra.mxu0 0
        %1713 = vmatprep.subr.bf16.mxu0 0
        %1714 = vmatpush1.bf16.msra.mxu0 0
        %1715 = vmatprep.subr.bf16.mxu0 0
        %1716 = vmatpush1.bf16.msra.mxu0 0
        %1717 = vmatprep.subr.bf16.mxu0 0
        %1718 = vmatpush1.bf16.msra.mxu0 0
        %1719 = vmatprep.subr.bf16.mxu0 0
        %1720 = vmatpush1.bf16.msra.mxu0 0
        %1721 = vmatprep.subr.bf16.mxu0 0
        %1722 = vmatpush1.bf16.msra.mxu0 0
        %1723 = vmatprep.subr.bf16.mxu0 0
        %1724 = vmatpush1.bf16.msra.mxu0 0
        %1725 = vmatprep.mubr.bf16.mxu0 0
        %1726 = vmatmul.mubr.bf16.gmra.mrb[0].mxu0 %v1688
        %v1727 = vpop.f32.mrb[0].mxu0
        %v1728 = vadd.f32 0.0, %v1727
        %v1729 = vpop.f32.mrb[0].mxu0
        %v1730 = vpop.f32.mrb[0].mxu0
        %v1731 = vpop.f32.mrb[0].mxu0
        %1732 = vdwg.mxu0
        %1733 = vrot.lane.b32.xlu0 %v943, 64
        %v1734 = vpop.permute.xlu0 %1733
        %v1736 = vsel %vm948, %v1442, 0
        %v1739 = vsel %vm1449, %v1734, 0
        %1741 = vmatprep.subr.bf16.mxu0 0
        %1742 = vmatpush1.bf16.msra.mxu0 %v1739
        %1743 = vmatprep.subr.bf16.mxu0 0
        %1744 = vmatpush1.bf16.msra.mxu0 0
        %1745 = vmatprep.subr.bf16.mxu0 0
        %1746 = vmatpush1.bf16.msra.mxu0 0
        %1747 = vmatprep.subr.bf16.mxu0 0
        %1748 = vmatpush1.bf16.msra.mxu0 0
        %1749 = vmatprep.subr.bf16.mxu0 0
        %1750 = vmatpush1.bf16.msra.mxu0 0
        %1751 = vmatprep.subr.bf16.mxu0 0
        %1752 = vmatpush1.bf16.msra.mxu0 0
        %1753 = vmatprep.subr.bf16.mxu0 0
        %1754 = vmatpush1.bf16.msra.mxu0 0
        %1755 = vmatprep.subr.bf16.mxu0 0
        %1756 = vmatpush1.bf16.msra.mxu0 0
        %1757 = vmatprep.subr.bf16.mxu0 0
        %1758 = vmatpush1.bf16.msra.mxu0 0
        %1759 = vmatprep.subr.bf16.mxu0 0
        %1760 = vmatpush1.bf16.msra.mxu0 0
        %1761 = vmatprep.subr.bf16.mxu0 0
        %1762 = vmatpush1.bf16.msra.mxu0 0
        %1763 = vmatprep.subr.bf16.mxu0 0
        %1764 = vmatpush1.bf16.msra.mxu0 0
        %1765 = vmatprep.subr.bf16.mxu0 0
        %1766 = vmatpush1.bf16.msra.mxu0 0
        %1767 = vmatprep.subr.bf16.mxu0 0
        %1768 = vmatpush1.bf16.msra.mxu0 0
        %1769 = vmatprep.subr.bf16.mxu0 0
        %1770 = vmatpush1.bf16.msra.mxu0 0
        %1771 = vmatprep.subr.bf16.mxu0 0
        %1772 = vmatpush1.bf16.msra.mxu0 0
        %1773 = vmatprep.mubr.bf16.mxu0 0
        %1774 = vmatmul.mubr.bf16.gmra.mrb[0].mxu0 %v1736
        %v1775 = vpop.f32.mrb[0].mxu0
        %v1776 = vadd.f32 0.0, %v1775
        %v1777 = vpop.f32.mrb[0].mxu0
        %v1778 = vpop.f32.mrb[0].mxu0
        %v1779 = vpop.f32.mrb[0].mxu0
        %1780 = vdwg.mxu0
        %1781 = vrot.lane.b32.xlu0 %v944, 64
        %v1782 = vpop.permute.xlu0 %1781
        %v1784 = vsel %vm948, %v1443, 0
        %v1787 = vsel %vm1449, %v1782, 0
        %1789 = vmatprep.subr.bf16.mxu0 0
        %1790 = vmatpush1.bf16.msra.mxu0 %v1787
        %1791 = vmatprep.subr.bf16.mxu0 0
        %1792 = vmatpush1.bf16.msra.mxu0 0
        %1793 = vmatprep.subr.bf16.mxu0 0
        %1794 = vmatpush1.bf16.msra.mxu0 0
        %1795 = vmatprep.subr.bf16.mxu0 0
        %1796 = vmatpush1.bf16.msra.mxu0 0
        %1797 = vmatprep.subr.bf16.mxu0 0
        %1798 = vmatpush1.bf16.msra.mxu0 0
        %1799 = vmatprep.subr.bf16.mxu0 0
        %1800 = vmatpush1.bf16.msra.mxu0 0
        %1801 = vmatprep.subr.bf16.mxu0 0
        %1802 = vmatpush1.bf16.msra.mxu0 0
        %1803 = vmatprep.subr.bf16.mxu0 0
        %1804 = vmatpush1.bf16.msra.mxu0 0
        %1805 = vmatprep.subr.bf16.mxu0 0
        %1806 = vmatpush1.bf16.msra.mxu0 0
        %1807 = vmatprep.subr.bf16.mxu0 0
        %1808 = vmatpush1.bf16.msra.mxu0 0
        %1809 = vmatprep.subr.bf16.mxu0 0
        %1810 = vmatpush1.bf16.msra.mxu0 0
        %1811 = vmatprep.subr.bf16.mxu0 0
        %1812 = vmatpush1.bf16.msra.mxu0 0
        %1813 = vmatprep.subr.bf16.mxu0 0
        %1814 = vmatpush1.bf16.msra.mxu0 0
        %1815 = vmatprep.subr.bf16.mxu0 0
        %1816 = vmatpush1.bf16.msra.mxu0 0
        %1817 = vmatprep.subr.bf16.mxu0 0
        %1818 = vmatpush1.bf16.msra.mxu0 0
        %1819 = vmatprep.subr.bf16.mxu0 0
        %1820 = vmatpush1.bf16.msra.mxu0 0
        %1821 = vmatprep.mubr.bf16.mxu0 0
        %1822 = vmatmul.mubr.bf16.gmra.mrb[0].mxu0 %v1784
        %v1823 = vpop.f32.mrb[0].mxu0
        %v1824 = vadd.f32 0.0, %v1823
        %v1825 = vpop.f32.mrb[0].mxu0
        %v1826 = vpop.f32.mrb[0].mxu0
        %v1827 = vpop.f32.mrb[0].mxu0
        %1828 = vdwg.mxu0
        %v1829 = vpack.c.bf16 %v1536, %v1488
        %v1830 = vld [vmem:[%s727] sm:$0xf]
        %v1831 = vpack.c.bf16 %v1632, %v1584
        %s1832 = scalar_lea.vmem %s727, 4
        %v1833 = vld [vmem:[%s1832] sm:$0xf]
        %v1835 = vsel %vm948, %v1831, 0
        %v1838 = vsel %vm1449, %v1833, 0
        %1840 = vmatprep.subr.bf16.mxu0 0
        %1841 = vmatpush1.bf16.msra.mxu0 %v1838
        %1842 = vmatprep.subr.bf16.mxu0 0
        %1843 = vmatpush1.bf16.msra.mxu0 0
        %1844 = vmatprep.subr.bf16.mxu0 0
        %1845 = vmatpush1.bf16.msra.mxu0 0
        %1846 = vmatprep.subr.bf16.mxu0 0
        %1847 = vmatpush1.bf16.msra.mxu0 0
        %1848 = vmatprep.subr.bf16.mxu0 0
        %1849 = vmatpush1.bf16.msra.mxu0 0
        %1850 = vmatprep.subr.bf16.mxu0 0
        %1851 = vmatpush1.bf16.msra.mxu0 0
        %1852 = vmatprep.subr.bf16.mxu0 0
        %1853 = vmatpush1.bf16.msra.mxu0 0
        %1854 = vmatprep.subr.bf16.mxu0 0
        %1855 = vmatpush1.bf16.msra.mxu0 0
        %1856 = vmatprep.subr.bf16.mxu0 0
        %1857 = vmatpush1.bf16.msra.mxu0 0
        %1858 = vmatprep.subr.bf16.mxu0 0
        %1859 = vmatpush1.bf16.msra.mxu0 0
        %1860 = vmatprep.subr.bf16.mxu0 0
        %1861 = vmatpush1.bf16.msra.mxu0 0
        %1862 = vmatprep.subr.bf16.mxu0 0
        %1863 = vmatpush1.bf16.msra.mxu0 0
        %1864 = vmatprep.subr.bf16.mxu0 0
        %1865 = vmatpush1.bf16.msra.mxu0 0
        %1866 = vmatprep.subr.bf16.mxu0 0
        %1867 = vmatpush1.bf16.msra.mxu0 0
        %1868 = vmatprep.subr.bf16.mxu0 0
        %1869 = vmatpush1.bf16.msra.mxu0 0
        %1870 = vmatprep.subr.bf16.mxu0 0
        %1871 = vmatpush1.bf16.msra.mxu0 0
        %1872 = vmatprep.mubr.bf16.mxu0 0
        %1873 = vmatmul.mubr.bf16.gmra.mrb[0].mxu0 %v1835
        %v1874 = vpop.f32.mrb[0].mxu0
        %v1875 = vadd.f32 0.0, %v1874
        %v1876 = vpop.f32.mrb[0].mxu0
        %v1877 = vpop.f32.mrb[0].mxu0
        %v1878 = vadd.f32 0.0, %v1877
        %v1879 = vpop.f32.mrb[0].mxu0
        %1880 = vdwg.mxu0
        %v1882 = vsel %vm948, %v1829, 0
        %v1885 = vsel %vm1449, %v1830, 0
        %1887 = vmatprep.subr.bf16.mxu0 0
        %1888 = vmatpush1.bf16.msra.mxu0 %v1885
        %1889 = vmatprep.subr.bf16.mxu0 0
        %1890 = vmatpush1.bf16.msra.mxu0 0
        %1891 = vmatprep.subr.bf16.mxu0 0
        %1892 = vmatpush1.bf16.msra.mxu0 0
        %1893 = vmatprep.subr.bf16.mxu0 0
        %1894 = vmatpush1.bf16.msra.mxu0 0
        %1895 = vmatprep.subr.bf16.mxu0 0
        %1896 = vmatpush1.bf16.msra.mxu0 0
        %1897 = vmatprep.subr.bf16.mxu0 0
        %1898 = vmatpush1.bf16.msra.mxu0 0
        %1899 = vmatprep.subr.bf16.mxu0 0
        %1900 = vmatpush1.bf16.msra.mxu0 0
        %1901 = vmatprep.subr.bf16.mxu0 0
        %1902 = vmatpush1.bf16.msra.mxu0 0
        %1903 = vmatprep.subr.bf16.mxu0 0
        %1904 = vmatpush1.bf16.msra.mxu0 0
        %1905 = vmatprep.subr.bf16.mxu0 0
        %1906 = vmatpush1.bf16.msra.mxu0 0
        %1907 = vmatprep.subr.bf16.mxu0 0
        %1908 = vmatpush1.bf16.msra.mxu0 0
        %1909 = vmatprep.subr.bf16.mxu0 0
        %1910 = vmatpush1.bf16.msra.mxu0 0
        %1911 = vmatprep.subr.bf16.mxu0 0
        %1912 = vmatpush1.bf16.msra.mxu0 0
        %1913 = vmatprep.subr.bf16.mxu0 0
        %1914 = vmatpush1.bf16.msra.mxu0 0
        %1915 = vmatprep.subr.bf16.mxu0 0
        %1916 = vmatpush1.bf16.msra.mxu0 0
        %1917 = vmatprep.subr.bf16.mxu0 0
        %1918 = vmatpush1.bf16.msra.mxu0 0
        %1919 = vmatprep.mubr.bf16.mxu0 0
        %1920 = vmatmul.mubr.bf16.gmra.mrb[0].mxu0 %v1882
        %v1921 = vpop.f32.mrb[0].mxu0
        %v1922 = vadd.f32 %v1875, %v1921
        %v1923 = vpop.f32.mrb[0].mxu0
        %v1924 = vpop.f32.mrb[0].mxu0
        %v1925 = vadd.f32 %v1878, %v1924
        %v1926 = vpop.f32.mrb[0].mxu0
        %1927 = vdwg.mxu0
        %v1928 = vpack.c.bf16 %v1728, %v1680
        %s1929 = scalar_lea.vmem %s727, 8
        %v1930 = vld [vmem:[%s1929] sm:$0xf]
        %v1932 = vsel %vm948, %v1928, 0
        %v1935 = vsel %vm1449, %v1930, 0
        %1937 = vmatprep.subr.bf16.mxu0 0
        %1938 = vmatpush1.bf16.msra.mxu0 %v1935
        %1939 = vmatprep.subr.bf16.mxu0 0
        %1940 = vmatpush1.bf16.msra.mxu0 0
        %1941 = vmatprep.subr.bf16.mxu0 0
        %1942 = vmatpush1.bf16.msra.mxu0 0
        %1943 = vmatprep.subr.bf16.mxu0 0
        %1944 = vmatpush1.bf16.msra.mxu0 0
        %1945 = vmatprep.subr.bf16.mxu0 0
        %1946 = vmatpush1.bf16.msra.mxu0 0
        %1947 = vmatprep.subr.bf16.mxu0 0
        %1948 = vmatpush1.bf16.msra.mxu0 0
        %1949 = vmatprep.subr.bf16.mxu0 0
        %1950 = vmatpush1.bf16.msra.mxu0 0
        %1951 = vmatprep.subr.bf16.mxu0 0
        %1952 = vmatpush1.bf16.msra.mxu0 0
        %1953 = vmatprep.subr.bf16.mxu0 0
        %1954 = vmatpush1.bf16.msra.mxu0 0
        %1955 = vmatprep.subr.bf16.mxu0 0
        %1956 = vmatpush1.bf16.msra.mxu0 0
        %1957 = vmatprep.subr.bf16.mxu0 0
        %1958 = vmatpush1.bf16.msra.mxu0 0
        %1959 = vmatprep.subr.bf16.mxu0 0
        %1960 = vmatpush1.bf16.msra.mxu0 0
        %1961 = vmatprep.subr.bf16.mxu0 0
        %1962 = vmatpush1.bf16.msra.mxu0 0
        %1963 = vmatprep.subr.bf16.mxu0 0
        %1964 = vmatpush1.bf16.msra.mxu0 0
        %1965 = vmatprep.subr.bf16.mxu0 0
        %1966 = vmatpush1.bf16.msra.mxu0 0
        %1967 = vmatprep.subr.bf16.mxu0 0
        %1968 = vmatpush1.bf16.msra.mxu0 0
        %1969 = vmatprep.mubr.bf16.mxu0 0
        %1970 = vmatmul.mubr.bf16.gmra.mrb[0].mxu0 %v1932
        %v1971 = vpop.f32.mrb[0].mxu0
        %v1972 = vadd.f32 0.0, %v1971
        %v1973 = vpop.f32.mrb[0].mxu0
        %v1974 = vpop.f32.mrb[0].mxu0
        %v1975 = vadd.f32 0.0, %v1974
        %v1976 = vpop.f32.mrb[0].mxu0
        %1977 = vdwg.mxu0
        %v1978 = vadd.f32 %v1922, %v1972
        %v1979 = vadd.f32 %v1925, %v1975
        %v1980 = vpack.c.bf16 %v1824, %v1776
        %s1981 = scalar_lea.vmem %s727, 12
        %v1982 = vld [vmem:[%s1981] sm:$0xf]
        %v1984 = vsel %vm948, %v1980, 0
        %v1987 = vsel %vm1449, %v1982, 0
        %1989 = vmatprep.subr.bf16.mxu0 0
        %1990 = vmatpush1.bf16.msra.mxu0 %v1987
        %1991 = vmatprep.subr.bf16.mxu0 0
        %1992 = vmatpush1.bf16.msra.mxu0 0
        %1993 = vmatprep.subr.bf16.mxu0 0
        %1994 = vmatpush1.bf16.msra.mxu0 0
        %1995 = vmatprep.subr.bf16.mxu0 0
        %1996 = vmatpush1.bf16.msra.mxu0 0
        %1997 = vmatprep.subr.bf16.mxu0 0
        %1998 = vmatpush1.bf16.msra.mxu0 0
        %1999 = vmatprep.subr.bf16.mxu0 0
        %2000 = vmatpush1.bf16.msra.mxu0 0
        %2001 = vmatprep.subr.bf16.mxu0 0
        %2002 = vmatpush1.bf16.msra.mxu0 0
        %2003 = vmatprep.subr.bf16.mxu0 0
        %2004 = vmatpush1.bf16.msra.mxu0 0
        %2005 = vmatprep.subr.bf16.mxu0 0
        %2006 = vmatpush1.bf16.msra.mxu0 0
        %2007 = vmatprep.subr.bf16.mxu0 0
        %2008 = vmatpush1.bf16.msra.mxu0 0
        %2009 = vmatprep.subr.bf16.mxu0 0
        %2010 = vmatpush1.bf16.msra.mxu0 0
        %2011 = vmatprep.subr.bf16.mxu0 0
        %2012 = vmatpush1.bf16.msra.mxu0 0
        %2013 = vmatprep.subr.bf16.mxu0 0
        %2014 = vmatpush1.bf16.msra.mxu0 0
        %2015 = vmatprep.subr.bf16.mxu0 0
        %2016 = vmatpush1.bf16.msra.mxu0 0
        %2017 = vmatprep.subr.bf16.mxu0 0
        %2018 = vmatpush1.bf16.msra.mxu0 0
        %2019 = vmatprep.subr.bf16.mxu0 0
        %2020 = vmatpush1.bf16.msra.mxu0 0
        %2021 = vmatprep.mubr.bf16.mxu0 0
        %2022 = vmatmul.mubr.bf16.gmra.mrb[0].mxu0 %v1984
        %v2023 = vpop.f32.mrb[0].mxu0
        %v2024 = vadd.f32 0.0, %v2023
        %v2025 = vpop.f32.mrb[0].mxu0
        %v2026 = vpop.f32.mrb[0].mxu0
        %v2027 = vadd.f32 0.0, %v2026
        %v2028 = vpop.f32.mrb[0].mxu0
        %2029 = vdwg.mxu0
        %v2030 = vadd.f32 %v1978, %v2024
        %v2031 = vadd.f32 %v1979, %v2027
        %v2032 = vld [vmem:[%s730] sm:$0x1]
        %v2034 = vlaneseq
        %v2035 = vshrl.u32 %v2034, 7
        %v2036 = vsub.s32 0, %v2035
        %v2037 = vrot.slane %v2032, %v2036
        %v2039 = vadd.f32 %v2030, %v2037
        %v2040 = vadd.f32 %v2031, %v2037
        %v2041 = vadd.f32 %v771, %v2039
        %v2042 = vadd.f32 %v772, %v2040
        %2043 = vst.msk [vmem:[#allocation2] sm:$0xff] %vm775, %v2041
        %2044 = vst.msk [vmem:[#allocation2 + $0x8] sm:$0xff] %vm775, %v2042
        %v2045 = vld [vmem:[#allocation2] sm:$0xff]
        %v2046 = vld [vmem:[#allocation2 + $0x8] sm:$0xff]
        %v2047 = vld [vmem:[%s733] sm:$0x1]
        %v2048 = vld [vmem:[%s736] sm:$0x1]
        %v2049 = vsel %vm775, %v2045, 0.0
        %2050 = vadd.xlane.f32.xlu0 %v2049
        %v2051 = vpop.xlane.xlu0 %2050
        %v2052 = vsel %vm775, %v2046, 0.0
        %2053 = vadd.xlane.f32.xlu0 %v2052
        %v2054 = vpop.xlane.xlu0 %2053
        %v2055 = vmul.f32 %v2051, %v782
        %v2056 = vmul.f32 %v2054, %v782
        %v2057 = vsub.f32 %v2045, %v2055
        %v2058 = vsub.f32 %v2046, %v2056
        %v2059 = vmul.f32 %v2057, %v2057
        %v2060 = vmul.f32 %v2058, %v2058
        %v2061 = vsel %vm775, %v2059, 0.0
        %2062 = vadd.xlane.f32.xlu0 %v2061
        %v2063 = vpop.xlane.xlu0 %2062
        %v2064 = vsel %vm775, %v2060, 0.0
        %2065 = vadd.xlane.f32.xlu0 %v2064
        %v2066 = vpop.xlane.xlu0 %2065
        %v2067 = vmul.f32 %v2063, %v782
        %v2068 = vmul.f32 %v2066, %v782
        %v2069 = vadd.f32 %v2067, 1e-05
        %v2070 = vadd.f32 %v2068, 1e-05
        %v2071 = vrsqrt.pop %v2069
        %v2072 = vrsqrt.pop %v2070
        %v2073 = vmul.f32 %v2057, %v2071
        %v2074 = vmul.f32 %v2058, %v2072
        %v2076 = vlaneseq
        %v2077 = vshrl.u32 %v2076, 7
        %v2078 = vsub.s32 0, %v2077
        %v2079 = vrot.slane %v2047, %v2078
        %v2081 = vmul.f32 %v2073, %v2079
        %v2082 = vmul.f32 %v2074, %v2079
        %v2084 = vlaneseq
        %v2085 = vshrl.u32 %v2084, 7
        %v2086 = vsub.s32 0, %v2085
        %v2087 = vrot.slane %v2048, %v2086
        %v2089 = vadd.f32 %v2081, %v2087
        %v2090 = vadd.f32 %v2082, %v2087
        %v2091 = vpack.c.bf16 %v2090, %v2089
        %v2092 = vld [vmem:[%s741] sm:$0xf]
        %v2093 = vld [vmem:[%s741 + $0x4] sm:$0xf]
        %v2094 = vld [vmem:[%s741 + $0x8] sm:$0xf]
        %v2095 = vld [vmem:[%s741 + $0xc] sm:$0xf]
        %v2096 = vld [vmem:[%s744] sm:$0x1]
        %v2098 = vlaneseq
        %v2099 = vshrl.u32 %v2098, 7
        %v2100 = vsub.s32 0, %v2099
        %v2101 = vrot.slane %v2096, %v2100
        %v2107 = vunpack.c.l.b16 %v2092
        %v2108 = vunpack.c.l.b16 %v2093
        %v2109 = vunpack.c.l.b16 %v2094
        %v2110 = vunpack.c.l.b16 %v2095
        %v2111 = vpack.c.b16 %v2108, %v2107
        %v2112 = vpack.c.b16 %v2110, %v2109
        %v2116 = vsel %vm775, %v2091, 0
        %2118 = vmatprep.subr.bf16.mxu0 0
        %2119 = vmatpush1.bf16.msra.mxu0 %v2111
        %2120 = vmatprep.subr.bf16.mxu0 0
        %2121 = vmatpush1.bf16.msra.mxu0 %v2112
        %2122 = vmatprep.subr.bf16.mxu0 0
        %2123 = vmatpush1.bf16.msra.mxu0 0
        %2124 = vmatprep.subr.bf16.mxu0 0
        %2125 = vmatpush1.bf16.msra.mxu0 0
        %2126 = vmatprep.subr.bf16.mxu0 0
        %2127 = vmatpush1.bf16.msra.mxu0 0
        %2128 = vmatprep.subr.bf16.mxu0 0
        %2129 = vmatpush1.bf16.msra.mxu0 0
        %2130 = vmatprep.subr.bf16.mxu0 0
        %2131 = vmatpush1.bf16.msra.mxu0 0
        %2132 = vmatprep.subr.bf16.mxu0 0
        %2133 = vmatpush1.bf16.msra.mxu0 0
        %2134 = vmatprep.subr.bf16.mxu0 0
        %2135 = vmatpush1.bf16.msra.mxu0 0
        %2136 = vmatprep.subr.bf16.mxu0 0
        %2137 = vmatpush1.bf16.msra.mxu0 0
        %2138 = vmatprep.subr.bf16.mxu0 0
        %2139 = vmatpush1.bf16.msra.mxu0 0
        %2140 = vmatprep.subr.bf16.mxu0 0
        %2141 = vmatpush1.bf16.msra.mxu0 0
        %2142 = vmatprep.subr.bf16.mxu0 0
        %2143 = vmatpush1.bf16.msra.mxu0 0
        %2144 = vmatprep.subr.bf16.mxu0 0
        %2145 = vmatpush1.bf16.msra.mxu0 0
        %2146 = vmatprep.subr.bf16.mxu0 0
        %2147 = vmatpush1.bf16.msra.mxu0 0
        %2148 = vmatprep.subr.bf16.mxu0 0
        %2149 = vmatpush1.bf16.msra.mxu0 0
        %2150 = vmatprep.mubr.bf16.mxu0 0
        %2151 = vmatmul.mubr.bf16.gmra.mrb[0].mxu0 %v2116
        %v2152 = vpop.f32.mrb[0].mxu0
        %v2153 = vadd.f32 %v2101, %v2152
        %v2154 = vpop.f32.mrb[0].mxu0
        %v2155 = vpop.f32.mrb[0].mxu0
        %v2156 = vadd.f32 %v2101, %v2155
        %v2157 = vpop.f32.mrb[0].mxu0
        %2158 = vdwg.mxu0
        %v2159 = vmul.f32 %v2153, -1.702
        %v2160 = vmul.f32 %v2156, -1.702
        %v2161 = vmul.f32 %v2159, 1.442695
        %v2162 = vpow.pop %v2161
        %v2163 = vmul.f32 %v2160, 1.442695
        %v2164 = vpow.pop %v2163
        %v2165 = vadd.f32 %v2162, 1.0
        %v2166 = vadd.f32 %v2164, 1.0
        %v2167 = vrcp.pop %v2165
        %v2168 = vmul.f32 1.0, %v2167
        %v2169 = vrcp.pop %v2166
        %v2170 = vmul.f32 1.0, %v2169
        %v2171 = vmul.f32 %v2153, %v2168
        %v2172 = vmul.f32 %v2156, %v2170
        %v2173 = vpack.c.bf16 %v2172, %v2171
        %v2174 = vld [vmem:[%s749] sm:$0xf]
        %v2175 = vld [vmem:[%s749 + $0x4] sm:$0xf]
        %v2176 = vld [vmem:[%s749 + $0x8] sm:$0xf]
        %v2177 = vld [vmem:[%s749 + $0xc] sm:$0xf]
        %v2178 = vld [vmem:[%s749 + $0x10] sm:$0xf]
        %v2179 = vld [vmem:[%s749 + $0x14] sm:$0xf]
        %v2180 = vld [vmem:[%s749 + $0x18] sm:$0xf]
        %v2181 = vld [vmem:[%s749 + $0x1c] sm:$0xf]
        %v2182 = vld [vmem:[%s749 + $0x20] sm:$0xf]
        %v2183 = vld [vmem:[%s749 + $0x24] sm:$0xf]
        %v2184 = vld [vmem:[%s749 + $0x28] sm:$0xf]
        %v2185 = vld [vmem:[%s749 + $0x2c] sm:$0xf]
        %v2186 = vld [vmem:[%s749 + $0x30] sm:$0xf]
        %v2187 = vld [vmem:[%s749 + $0x34] sm:$0xf]
        %v2188 = vld [vmem:[%s749 + $0x38] sm:$0xf]
        %v2189 = vld [vmem:[%s749 + $0x3c] sm:$0xf]
        %v2190 = vld [vmem:[%s752] sm:$0x1]
        %v2192 = vlaneseq
        %v2193 = vshrl.u32 %v2192, 7
        %v2194 = vsub.s32 0, %v2193
        %v2195 = vrot.slane %v2190, %v2194
        %v2213 = vunpack.c.l.b16 %v2174
        %v2214 = vunpack.c.l.b16 %v2175
        %v2215 = vunpack.c.l.b16 %v2176
        %v2216 = vunpack.c.l.b16 %v2177
        %v2217 = vunpack.c.l.b16 %v2178
        %v2218 = vunpack.c.l.b16 %v2179
        %v2219 = vunpack.c.l.b16 %v2180
        %v2220 = vunpack.c.l.b16 %v2181
        %v2221 = vunpack.c.l.b16 %v2182
        %v2222 = vunpack.c.l.b16 %v2183
        %v2223 = vunpack.c.l.b16 %v2184
        %v2224 = vunpack.c.l.b16 %v2185
        %v2225 = vunpack.c.l.b16 %v2186
        %v2226 = vunpack.c.l.b16 %v2187
        %v2227 = vunpack.c.l.b16 %v2188
        %v2228 = vunpack.c.l.b16 %v2189
        %v2229 = vpack.c.b16 %v2214, %v2213
        %v2230 = vpack.c.b16 %v2216, %v2215
        %v2231 = vpack.c.b16 %v2218, %v2217
        %v2232 = vpack.c.b16 %v2220, %v2219
        %v2233 = vpack.c.b16 %v2222, %v2221
        %v2234 = vpack.c.b16 %v2224, %v2223
        %v2235 = vpack.c.b16 %v2226, %v2225
        %v2236 = vpack.c.b16 %v2228, %v2227
        %2245 = vmatprep.subr.bf16.mxu0 0
        %2246 = vmatpush1.bf16.msra.mxu0 %v2229
        %2247 = vmatprep.subr.bf16.mxu0 0
        %2248 = vmatpush1.bf16.msra.mxu0 %v2230
        %2249 = vmatprep.subr.bf16.mxu0 0
        %2250 = vmatpush1.bf16.msra.mxu0 %v2231
        %2251 = vmatprep.subr.bf16.mxu0 0
        %2252 = vmatpush1.bf16.msra.mxu0 %v2232
        %2253 = vmatprep.subr.bf16.mxu0 0
        %2254 = vmatpush1.bf16.msra.mxu0 %v2233
        %2255 = vmatprep.subr.bf16.mxu0 0
        %2256 = vmatpush1.bf16.msra.mxu0 %v2234
        %2257 = vmatprep.subr.bf16.mxu0 0
        %2258 = vmatpush1.bf16.msra.mxu0 %v2235
        %2259 = vmatprep.subr.bf16.mxu0 0
        %2260 = vmatpush1.bf16.msra.mxu0 %v2236
        %2261 = vmatprep.subr.bf16.mxu0 0
        %2262 = vmatpush1.bf16.msra.mxu0 0
        %2263 = vmatprep.subr.bf16.mxu0 0
        %2264 = vmatpush1.bf16.msra.mxu0 0
        %2265 = vmatprep.subr.bf16.mxu0 0
        %2266 = vmatpush1.bf16.msra.mxu0 0
        %2267 = vmatprep.subr.bf16.mxu0 0
        %2268 = vmatpush1.bf16.msra.mxu0 0
        %2269 = vmatprep.subr.bf16.mxu0 0
        %2270 = vmatpush1.bf16.msra.mxu0 0
        %2271 = vmatprep.subr.bf16.mxu0 0
        %2272 = vmatpush1.bf16.msra.mxu0 0
        %2273 = vmatprep.subr.bf16.mxu0 0
        %2274 = vmatpush1.bf16.msra.mxu0 0
        %2275 = vmatprep.subr.bf16.mxu0 0
        %2276 = vmatpush1.bf16.msra.mxu0 0
        %2277 = vmatprep.mubr.bf16.mxu0 0
        %2278 = vmatmul.mubr.bf16.gmra.mrb[0].mxu0 %v2173
        %v2279 = vpop.f32.mrb[0].mxu0
        %v2280 = vadd.f32 %v2195, %v2279
        %v2281 = vpop.f32.mrb[0].mxu0
        %v2282 = vpop.f32.mrb[0].mxu0
        %v2283 = vadd.f32 %v2195, %v2282
        %v2284 = vpop.f32.mrb[0].mxu0
        %2285 = vdwg.mxu0
        %v2286 = vadd.f32 %v2045, %v2280
        %v2287 = vadd.f32 %v2046, %v2283
        %2288 = vst.msk [vmem:[#allocation2] sm:$0xff] %vm775, %v2286
        %2289 = vst.msk [vmem:[#allocation2 + $0x8] sm:$0xff] %vm775, %v2287
        %p2290 = scmp.eq.s32.totalorder %s41, 1
        // Predicated region
        $region93: #{tpu_custom_call.1} parent=87 // pred_check
          %p2291 = pneg %p2290
        $region94: #{tpu_custom_call.1} parent=87 // pred_check_branch
          %2293 = sbr.rel (%p2291) target = $region96
        $region95: #{tpu_custom_call.1} parent=87 // pred_region
          %s2294 = smul.u32 %s40, 2
          %s2295 = sld [smem:[#allocation4 + %s2294]]
          %s2296 = scalar_lea.vmem [#allocation2], %s2295
          %v2297 = vld [vmem:[%s2296] sm:$0x1]
          %s2298 = sadd.s32 %s2294, 1
          %s2299 = sld [smem:[#allocation4 + %s2298]]
          %s2300 = sadd.s32 %s2299, 8
          %s2301 = scalar_lea.vmem [#allocation2], %s2300
          %v2302 = vld [vmem:[%s2301] sm:$0x1]
          %v2304 = vrot.slane %v2302, 7
          %vm2306 = vcmask 1040384
          %v2307 = vsel %vm2306, %v2297, %v2304
          %v2308 = vld [vmem:[%s15] sm:$0x1]
          %v2309 = vld [vmem:[%s16] sm:$0x1]
          %vm2310 = vcmask 254976
          %v2311 = vsel %vm2310, %v2307, 0.0
          %2312 = vadd.xlane.f32.xlu0 %v2311
          %v2313 = vpop.xlane.xlu0 %2312
          %v2314 = vmul.f32 %v2313, %v782
          %v2315 = vsub.f32 %v2307, %v2314
          %v2316 = vmul.f32 %v2315, %v2315
          %v2317 = vsel %vm2310, %v2316, 0.0
          %2318 = vadd.xlane.f32.xlu0 %v2317
          %v2319 = vpop.xlane.xlu0 %2318
          %v2320 = vmul.f32 %v2319, %v782
          %v2321 = vadd.f32 %v2320, 1e-05
          %v2322 = vrsqrt.pop %v2321
          %v2323 = vmul.f32 %v2315, %v2322
          %v2325 = vlaneseq
          %v2326 = vshrl.u32 %v2325, 7
          %v2327 = vsub.s32 0, %v2326
          %v2328 = vrot.slane %v2308, %v2327
          %v2330 = vmul.f32 %v2323, %v2328
          %v2332 = vlaneseq
          %v2333 = vshrl.u32 %v2332, 7
          %v2334 = vsub.s32 0, %v2333
          %v2335 = vrot.slane %v2309, %v2334
          %v2337 = vadd.f32 %v2330, %v2335
          %v2338 = vpack.c.bf16 %v2337, %v2337
          %v2339 = vld [vmem:[%s17] sm:$0xf]
          %v2340 = vld [vmem:[%s17 + $0x4] sm:$0xf]
          %v2341 = vld [vmem:[%s17 + $0x8] sm:$0xf]
          %v2342 = vld [vmem:[%s17 + $0xc] sm:$0xf]
          %v2347 = vunpack.c.l.b16 %v2339
          %v2348 = vunpack.c.l.b16 %v2340
          %v2349 = vunpack.c.l.b16 %v2341
          %v2350 = vunpack.c.l.b16 %v2342
          %v2351 = vpack.c.b16 %v2348, %v2347
          %v2352 = vpack.c.b16 %v2350, %v2349
          %v2356 = vsel %vm775, %v2338, 0
          %2358 = vmatprep.subr.bf16.mxu0 0
          %2359 = vmatpush1.bf16.msra.mxu0 %v2351
          %2360 = vmatprep.subr.bf16.mxu0 0
          %2361 = vmatpush1.bf16.msra.mxu0 %v2352
          %2362 = vmatprep.subr.bf16.mxu0 0
          %2363 = vmatpush1.bf16.msra.mxu0 0
          %2364 = vmatprep.subr.bf16.mxu0 0
          %2365 = vmatpush1.bf16.msra.mxu0 0
          %2366 = vmatprep.subr.bf16.mxu0 0
          %2367 = vmatpush1.bf16.msra.mxu0 0
          %2368 = vmatprep.subr.bf16.mxu0 0
          %2369 = vmatpush1.bf16.msra.mxu0 0
          %2370 = vmatprep.subr.bf16.mxu0 0
          %2371 = vmatpush1.bf16.msra.mxu0 0
          %2372 = vmatprep.subr.bf16.mxu0 0
          %2373 = vmatpush1.bf16.msra.mxu0 0
          %2374 = vmatprep.subr.bf16.mxu0 0
          %2375 = vmatpush1.bf16.msra.mxu0 0
          %2376 = vmatprep.subr.bf16.mxu0 0
          %2377 = vmatpush1.bf16.msra.mxu0 0
          %2378 = vmatprep.subr.bf16.mxu0 0
          %2379 = vmatpush1.bf16.msra.mxu0 0
          %2380 = vmatprep.subr.bf16.mxu0 0
          %2381 = vmatpush1.bf16.msra.mxu0 0
          %2382 = vmatprep.subr.bf16.mxu0 0
          %2383 = vmatpush1.bf16.msra.mxu0 0
          %2384 = vmatprep.subr.bf16.mxu0 0
          %2385 = vmatpush1.bf16.msra.mxu0 0
          %2386 = vmatprep.subr.bf16.mxu0 0
          %2387 = vmatpush1.bf16.msra.mxu0 0
          %2388 = vmatprep.subr.bf16.mxu0 0
          %2389 = vmatpush1.bf16.msra.mxu0 0
          %2390 = vmatprep.mubr.bf16.mxu0 0
          %2391 = vmatmul.mubr.bf16.gmra.mrb[0].mxu0 %v2356
          %v2392 = vpop.f32.mrb[0].mxu0
          %v2393 = vadd.f32 0.0, %v2392
          %v2394 = vpop.f32.mrb[0].mxu0
          %v2395 = vpop.f32.mrb[0].mxu0
          %v2396 = vpop.f32.mrb[0].mxu0
          %2397 = vdwg.mxu0
          %2398 = vst [vmem:[#allocation5] sm:$0x3] %v2393
        $region96: #{tpu_custom_call.1} parent=87 // pred_fallthru
          _
        // Predicated region
        $region97: #{tpu_custom_call.1} parent=87 // pred_check
          %p2399 = pneg %p488
        $region98: #{tpu_custom_call.1} parent=87 // pred_check_branch
          %2401 = sbr.rel (%p2399) target = $region100
        $region99: #{tpu_custom_call.1} parent=87 // pred_region
          %s2403 = ssub.s32 32, 32
          %2404 = vsyncadd [#allocation6], %s2403
          %s2405 = smul.addr %s40, 32
          %s2406 = scalar_lea.hbm %s18, %s2405
          %s2408 = sshll.u32 [#allocation5], 4
          %s2409 = int_to_ptr.vmem [resolvable:$true] %s2408
          %2411 = dma.vmem_to_hbm [thread:$0]  %s2409, 32, %s2406, [#allocation6]
        $region100: #{tpu_custom_call.1} parent=87 // pred_fallthru
          _
        // Predicated region
        $region101: #{tpu_custom_call.1} parent=87 // pred_check
          %p2412 = pneg %p488
        $region102: #{tpu_custom_call.1} parent=87 // pred_check_branch
          %2414 = sbr.rel (%p2412) target = $region104
        $region103: #{tpu_custom_call.1} parent=87 // pred_region
          %2415 = dma.done [#allocation6], 32
        $region104: #{tpu_custom_call.1} parent=87 // pred_fallthru
          _
      $region88: #{tpu_custom_call.1} parent=5 // pred_fallthru
        _
      %p2416 = scmp.le.s32.totalorder 2, %s31
      // Predicated region
      $region105: #{tpu_custom_call.1} parent=5 // pred_check
        %p2417 = pneg %p2416
      $region106: #{tpu_custom_call.1} parent=5 // pred_check_branch
        %2419 = sbr.rel (%p2417) target = $region108
      $region107: #{tpu_custom_call.1} parent=5 // pred_region
        %s2420 = ssub.s32 %s31, 2
      $region108: #{tpu_custom_call.1} parent=5 // pred_fallthru
        _
    $region6: #{tpu_custom_call.1} parent=1 // loop_footer
      %s35 = sadd.s32 1, %s31
    $region7: #{tpu_custom_call.1} parent=1 // loop_footer_branch
      %30 = sbr.rel target = $region3
    $region8: #{tpu_custom_call.1} parent=1 // loop_exit
      _
    %2421 = vsyncpa [#allocation6], 1
    %s2422 = scalar_lea.sflag [#allocation6], 1
    %2423 = vsyncpa %s2422, 1

</llo_original>
